<compile_context>
chip_gen: v7x
topology: tpu7x:2x2x1
jax: 0.10.0
libtpu: 0.0.40
codegen_flags: <defaults>
</compile_context>

<pallas_src>
import jax
import jax.numpy as jnp
from jax.experimental import pallas as pl
from jax.experimental.pallas import tpu as pltpu


# ----------------------------------------------------------------------------
# Helpers
# ----------------------------------------------------------------------------
def _round_up(x, m):
    return (x + m - 1) // m * m


def _build_pool_patches(x_cndhw, ksize=3, pad=1, pool=2):
    """im2col for conv(k=3, p=1, s=1) fused-pool layout.

    x: (Cin, N, D, H, W)  ->  (pool^3, Cin*k^3, N*(D//2)*(H//2)*(W//2))
    patches[off, k, win]: tap k of the conv patch at pool-window `win`,
    window offset `off`.  k is ordered (Cin, kd, kh, kw) to match the
    PyTorch weight flattening; win is ordered (N, Do, Ho, Wo).
    """
    Cin, N, D, H, W = x_cndhw.shape
    Do, Ho, Wo = D // pool, H // pool, W // pool
    xp = jnp.pad(x_cndhw, ((0, 0), (0, 0), (pad, pad), (pad, pad), (pad, pad)))
    offsets = []
    for dd in range(pool):
        for hh in range(pool):
            for ww in range(pool):
                taps = []
                for a in range(ksize):
                    for b in range(ksize):
                        for c in range(ksize):
                            taps.append(
                                xp[:, :,
                                   dd + a: dd + a + pool * Do: pool,
                                   hh + b: hh + b + pool * Ho: pool,
                                   ww + c: ww + c + pool * Wo: pool])
                t = jnp.stack(taps, axis=1)  # (Cin, k^3, N, Do, Ho, Wo)
                offsets.append(t.reshape(Cin * ksize ** 3, N * Do * Ho * Wo))
    return jnp.stack(offsets, axis=0)        # (pool^3, Cin*k^3, Nwin)


# ----------------------------------------------------------------------------
# Pallas kernels
# ----------------------------------------------------------------------------
def _conv_pool_relu_kernel(w_ref, b_ref, p_ref, o_ref):
    """One lane-tile of: out = relu(bias + max_{off<8} (W @ P[off])).

    w: (Cout, K) bf16, b: (Cout, 1) f32, p: (8, K, nw) bf16, o: (Cout, nw) f32.
    Lane axis = spatial (lane-dense output); pooling + ReLU fused in-register.
    """
    w = w_ref[...]
    acc = jnp.dot(w, p_ref[0], preferred_element_type=jnp.float32)
    for off in range(1, 8):
        acc = jnp.maximum(
            acc, jnp.dot(w, p_ref[off], preferred_element_type=jnp.float32))
    o_ref[...] = jnp.maximum(acc + b_ref[...], 0.0)


def _linear_stack_kernel(x_ref, w0_ref, b0_ref, w1_ref, b1_ref,
                         w2_ref, b2_ref, o_ref):
    """Fused Linear->ReLU->Linear->ReLU->Linear->log_softmax.

    Matmul inputs bf16 (f32 accumulation); all epilogue math in f32.
    """
    h = jnp.dot(x_ref[...], w0_ref[...], preferred_element_type=jnp.float32)
    h = jnp.maximum(h + b0_ref[...], 0.0)
    h = jnp.dot(h.astype(jnp.bfloat16), w1_ref[...],
                preferred_element_type=jnp.float32)
    h = jnp.maximum(h + b1_ref[...], 0.0)
    logits = jnp.dot(h.astype(jnp.bfloat16), w2_ref[...],
                     preferred_element_type=jnp.float32) + b2_ref[...]
    m = jnp.max(logits, axis=1, keepdims=True)
    s = logits - m
    o_ref[...] = s - jnp.log(jnp.sum(jnp.exp(s), axis=1, keepdims=True))


# ----------------------------------------------------------------------------
# Pallas wrappers
# ----------------------------------------------------------------------------
def conv3d_pool_relu(x_cndhw, w, b, *, max_lane_block=1024):
    """Fused Conv3d(k=3, p=1, s=1) + MaxPool3d(2) + ReLU.

    x: (Cin, N, D, H, W); w: (Cout, Cin, 3, 3, 3) [PyTorch layout]; b: (Cout,)
    Returns (Cout, N, D//2, H//2, W//2), float32 (channel-major, lane-dense).
    """
    Cin, N, D, H, W = x_cndhw.shape
    Cout = w.shape[0]
    K = Cin * 27
    Do, Ho, Wo = D // 2, H // 2, W // 2
    Nwin = N * Do * Ho * Wo

    patches = _build_pool_patches(x_cndhw)            # (8, K, Nwin) f32

    # Lane-pad the spatial axis to a multiple of 128; use >=2 grid steps when
    # it is large enough so the "parallel" grid shards across v7x's two TCs.
    nwp = _round_up(Nwin, 128)
    if nwp >= 2 * max_lane_block:
        lane_block = max_lane_block
        nwp = _round_up(Nwin, lane_block)
    else:
        lane_block = nwp
    if nwp != Nwin:
        patches = jnp.pad(patches, ((0, 0), (0, 0), (0, nwp - Nwin)))

    patches = patches.astype(jnp.bfloat16)
    wm = w.reshape(Cout, K).astype(jnp.bfloat16)      # (Cin, kd, kh, kw) order
    bm = b.reshape(Cout, 1).astype(jnp.float32)

    out = pl.pallas_call(
        _conv_pool_relu_kernel,
        out_shape=jax.ShapeDtypeStruct((Cout, nwp), jnp.float32),
        grid_spec=pltpu.PrefetchScalarGridSpec(
            num_scalar_prefetch=0,
            grid=(nwp // lane_block,),
            in_specs=[
                pl.BlockSpec((Cout, K), lambda i: (0, 0)),
                pl.BlockSpec((Cout, 1), lambda i: (0, 0)),
                pl.BlockSpec((8, K, lane_block), lambda i: (0, 0, i)),
            ],
            out_specs=pl.BlockSpec((Cout, lane_block), lambda i: (0, i)),
        ),
        compiler_params=pltpu.CompilerParams(dimension_semantics=("parallel",)),
    )(wm, bm, patches)
    return out[:, :Nwin].reshape(Cout, N, Do, Ho, Wo)


def linear_stack(flat, params):
    """Fused lin0+ReLU -> lin1+ReLU -> lin2 -> log_softmax.  flat: (N, F) f32."""
    N, F = flat.shape
    w0 = params["lin0_w"].T.astype(jnp.bfloat16)      # (F, 32)
    w1 = params["lin1_w"].T.astype(jnp.bfloat16)      # (32, 16)
    w2 = params["lin2_w"].T.astype(jnp.bfloat16)      # (16, 2)
    b0 = params["lin0_b"].reshape(1, -1).astype(jnp.float32)
    b1 = params["lin1_b"].reshape(1, -1).astype(jnp.float32)
    b2 = params["lin2_b"].reshape(1, -1).astype(jnp.float32)
    n_out = w2.shape[1]

    def full(shp):
        return pl.BlockSpec(shp, lambda i: (0, 0))

    return pl.pallas_call(
        _linear_stack_kernel,
        out_shape=jax.ShapeDtypeStruct((N, n_out), jnp.float32),
        grid_spec=pltpu.PrefetchScalarGridSpec(
            num_scalar_prefetch=0,
            grid=(1,),
            in_specs=[
                full((N, F)),
                full(w0.shape), full(b0.shape),
                full(w1.shape), full(b1.shape),
                full(w2.shape), full(b2.shape),
            ],
            out_specs=full((N, n_out)),
        ),
        compiler_params=pltpu.CompilerParams(dimension_semantics=("arbitrary",)),
    )(flat.astype(jnp.bfloat16), w0, b0, w1, b1, w2, b2)


# ----------------------------------------------------------------------------
# ConfigNet forward (Pallas) and pure-JAX reference
# ----------------------------------------------------------------------------
def confignet_forward(x, params):
    # NCDHW -> (C, N, D, H, W): keeps conv outputs channel-major / lane-dense
    # between blocks with no intermediate transposes.
    h = jnp.transpose(x, (1, 0, 2, 3, 4))
    # Block 1: Conv3d -> MaxPool3d(2) -> ReLU   (fused)
    h = conv3d_pool_relu(h, params["conv0_w"], params["conv0_b"])
    # Block 2: Conv3d -> MaxPool3d(2) -> ReLU   (fused)
    h = conv3d_pool_relu(h, params["conv1_w"], params["conv1_b"])
    # x.view(-1, C*5*5*5): PyTorch flatten order is (C, D, H, W) per sample.
    N = x.shape[0]
    flat = jnp.transpose(h, (1, 0, 2, 3, 4)).reshape(N, -1)   # (N, 1000)
    # Fused linear stack + log_softmax.
    return linear_stack(flat, params)


def reference_forward(x, params):
    """Pure-JAX reference with the same numerics class (bf16 in, f32 acc)."""
    def conv3d(x, w, b):
        y = jax.lax.conv_general_dilated(
            x.astype(jnp.bfloat16), w.astype(jnp.bfloat16),
            window_strides=(1, 1, 1), padding=[(1, 1)] * 3,
            dimension_numbers=("NCDHW", "OIDHW", "NCDHW"),
            preferred_element_type=jnp.float32)
        return y + b.reshape(1, -1, 1, 1, 1)

    def pool(x):
        return jax.lax.reduce_window(
            x, -jnp.inf, jax.lax.max,
            window_dimensions=(1, 1, 2, 2, 2),
            window_strides=(1, 1, 2, 2, 2), padding="VALID")

    def lin(x, w, b):
        return jnp.dot(x.astype(jnp.bfloat16), w.T.astype(jnp.bfloat16),
                       preferred_element_type=jnp.float32) + b

    h = jax.nn.relu(pool(conv3d(x, params["conv0_w"], params["conv0_b"])))
    h = jax.nn.relu(pool(conv3d(h, params["conv1_w"], params["conv1_b"])))
    flat = h.reshape(h.shape[0], -1)
    h = jax.nn.relu(lin(flat, params["lin0_w"], params["lin0_b"]))
    h = jax.nn.relu(lin(h, params["lin1_w"], params["lin1_b"]))
    logits = lin(h, params["lin2_w"], params["lin2_b"])
    return jax.nn.log_softmax(logits, axis=1)


def init_params(key):
    # Shapes from ConfigNet.__init__ with the config above.
    # (config['bias'] is read but unused by the original module -> defaults.)
    shapes = {
        "conv0_w": (4, 1, 3, 3, 3),  "conv0_b": (4,),
        "conv1_w": (8, 4, 3, 3, 3),  "conv1_b": (8,),
        "lin0_w":  (32, 1000),       "lin0_b":  (32,),
        "lin1_w":  (16, 32),         "lin1_b":  (16,),
        "lin2_w":  (2, 16),          "lin2_b":  (2,),
    }
    keys = jax.random.split(key, len(shapes))
    params = {}
    for (name, shp), k in zip(shapes.items(), keys):
        params[name] = 0.05 * jax.random.normal(k, shp, dtype=jnp.float32)
    return params


if __name__ == "__main__":
    key = jax.random.PRNGKey(0)
    kx, kp = jax.random.split(key)
    # NCDHW input; spatial 20 -> (conv, pool)x2 -> 5x5x5 as the module assumes.
    x = jax.random.normal(kx, (2, 1, 20, 20, 20), dtype=jnp.float32)
    params = init_params(kp)

    out = confignet_forward(x, params)
    out = jax.block_until_ready(out)
    assert out.shape == (2, 2), out.shape

    ref = reference_forward(x, params)
    max_diff = float(jnp.max(jnp.abs(out - ref)))
    assert max_diff < 2e-3, f"mismatch vs pure-JAX reference: {max_diff}"

    print("KERNEL_OK")
</pallas_src>

<mosaic_0001>
module attributes {stable_mosaic.version = 11 : i64} {
  func.func @_conv_pool_relu_kernel(%arg0: i32, %arg1: memref<4x27xbf16, #tpu.memory_space<vmem>>, %arg2: memref<4x1xf32, #tpu.memory_space<vmem>>, %arg3: memref<8x27x1024xbf16, #tpu.memory_space<vmem>>, %arg4: memref<4x1024xf32, #tpu.memory_space<vmem>>) attributes {dimension_semantics = [#tpu.dimension_semantics<parallel>], iteration_bounds = array<i64: 2>, scalar_prefetch = 0 : i64, scratch_operands = 0 : i64, tpu.core_type = #tpu.core_type<tc>, window_params = [{pipeline_mode = #tpu.pipeline_mode<synchronous>, transform_indices = @transform_0, window_bounds = array<i64: 4, 27>}, {pipeline_mode = #tpu.pipeline_mode<synchronous>, transform_indices = @transform_1, window_bounds = array<i64: 4, 1>}, {transform_indices = @transform_2, window_bounds = array<i64: 8, 27, 1024>}, {transform_indices = @transform_3, window_bounds = array<i64: 4, 1024>}]} {
    %c0 = arith.constant 0 : index
    %c0_0 = arith.constant 0 : index
    %0 = vector.load %arg1[%c0, %c0_0] : memref<4x27xbf16, #tpu.memory_space<vmem>>, vector<4x27xbf16>
    %c0_1 = arith.constant 0 : index
    %c0_2 = arith.constant 0 : index
    %c0_3 = arith.constant 0 : index
    %1 = vector.load %arg3[%c0_1, %c0_2, %c0_3] : memref<8x27x1024xbf16, #tpu.memory_space<vmem>>, vector<1x27x1024xbf16>
    %2 = vector.shape_cast %1 : vector<1x27x1024xbf16> to vector<27x1024xbf16>
    %cst = arith.constant dense<0.000000e+00> : vector<4x1024xf32>
    %3 = tpu.matmul %0, %2, %cst {dimension_numbers = #tpu.dot_dimension_numbers<[1], [0], [0], [1], [0, 0, 1, 1], [], []>} : vector<4x27xbf16>, vector<27x1024xbf16>, vector<4x1024xf32> -> vector<4x1024xf32>
    %c1 = arith.constant 1 : index
    %c0_4 = arith.constant 0 : index
    %c0_5 = arith.constant 0 : index
    %4 = vector.load %arg3[%c1, %c0_4, %c0_5] : memref<8x27x1024xbf16, #tpu.memory_space<vmem>>, vector<1x27x1024xbf16>
    %5 = vector.shape_cast %4 : vector<1x27x1024xbf16> to vector<27x1024xbf16>
    %cst_6 = arith.constant dense<0.000000e+00> : vector<4x1024xf32>
    %6 = tpu.matmul %0, %5, %cst_6 {dimension_numbers = #tpu.dot_dimension_numbers<[1], [0], [0], [1], [0, 0, 1, 1], [], []>} : vector<4x27xbf16>, vector<27x1024xbf16>, vector<4x1024xf32> -> vector<4x1024xf32>
    %7 = arith.maximumf %3, %6 : vector<4x1024xf32>
    %c2 = arith.constant 2 : index
    %c0_7 = arith.constant 0 : index
    %c0_8 = arith.constant 0 : index
    %8 = vector.load %arg3[%c2, %c0_7, %c0_8] : memref<8x27x1024xbf16, #tpu.memory_space<vmem>>, vector<1x27x1024xbf16>
    %9 = vector.shape_cast %8 : vector<1x27x1024xbf16> to vector<27x1024xbf16>
    %cst_9 = arith.constant dense<0.000000e+00> : vector<4x1024xf32>
    %10 = tpu.matmul %0, %9, %cst_9 {dimension_numbers = #tpu.dot_dimension_numbers<[1], [0], [0], [1], [0, 0, 1, 1], [], []>} : vector<4x27xbf16>, vector<27x1024xbf16>, vector<4x1024xf32> -> vector<4x1024xf32>
    %11 = arith.maximumf %7, %10 : vector<4x1024xf32>
    %c3 = arith.constant 3 : index
    %c0_10 = arith.constant 0 : index
    %c0_11 = arith.constant 0 : index
    %12 = vector.load %arg3[%c3, %c0_10, %c0_11] : memref<8x27x1024xbf16, #tpu.memory_space<vmem>>, vector<1x27x1024xbf16>
    %13 = vector.shape_cast %12 : vector<1x27x1024xbf16> to vector<27x1024xbf16>
    %cst_12 = arith.constant dense<0.000000e+00> : vector<4x1024xf32>
    %14 = tpu.matmul %0, %13, %cst_12 {dimension_numbers = #tpu.dot_dimension_numbers<[1], [0], [0], [1], [0, 0, 1, 1], [], []>} : vector<4x27xbf16>, vector<27x1024xbf16>, vector<4x1024xf32> -> vector<4x1024xf32>
    %15 = arith.maximumf %11, %14 : vector<4x1024xf32>
    %c4 = arith.constant 4 : index
    %c0_13 = arith.constant 0 : index
    %c0_14 = arith.constant 0 : index
    %16 = vector.load %arg3[%c4, %c0_13, %c0_14] : memref<8x27x1024xbf16, #tpu.memory_space<vmem>>, vector<1x27x1024xbf16>
    %17 = vector.shape_cast %16 : vector<1x27x1024xbf16> to vector<27x1024xbf16>
    %cst_15 = arith.constant dense<0.000000e+00> : vector<4x1024xf32>
    %18 = tpu.matmul %0, %17, %cst_15 {dimension_numbers = #tpu.dot_dimension_numbers<[1], [0], [0], [1], [0, 0, 1, 1], [], []>} : vector<4x27xbf16>, vector<27x1024xbf16>, vector<4x1024xf32> -> vector<4x1024xf32>
    %19 = arith.maximumf %15, %18 : vector<4x1024xf32>
    %c5 = arith.constant 5 : index
    %c0_16 = arith.constant 0 : index
    %c0_17 = arith.constant 0 : index
    %20 = vector.load %arg3[%c5, %c0_16, %c0_17] : memref<8x27x1024xbf16, #tpu.memory_space<vmem>>, vector<1x27x1024xbf16>
    %21 = vector.shape_cast %20 : vector<1x27x1024xbf16> to vector<27x1024xbf16>
    %cst_18 = arith.constant dense<0.000000e+00> : vector<4x1024xf32>
    %22 = tpu.matmul %0, %21, %cst_18 {dimension_numbers = #tpu.dot_dimension_numbers<[1], [0], [0], [1], [0, 0, 1, 1], [], []>} : vector<4x27xbf16>, vector<27x1024xbf16>, vector<4x1024xf32> -> vector<4x1024xf32>
    %23 = arith.maximumf %19, %22 : vector<4x1024xf32>
    %c6 = arith.constant 6 : index
    %c0_19 = arith.constant 0 : index
    %c0_20 = arith.constant 0 : index
    %24 = vector.load %arg3[%c6, %c0_19, %c0_20] : memref<8x27x1024xbf16, #tpu.memory_space<vmem>>, vector<1x27x1024xbf16>
    %25 = vector.shape_cast %24 : vector<1x27x1024xbf16> to vector<27x1024xbf16>
    %cst_21 = arith.constant dense<0.000000e+00> : vector<4x1024xf32>
    %26 = tpu.matmul %0, %25, %cst_21 {dimension_numbers = #tpu.dot_dimension_numbers<[1], [0], [0], [1], [0, 0, 1, 1], [], []>} : vector<4x27xbf16>, vector<27x1024xbf16>, vector<4x1024xf32> -> vector<4x1024xf32>
    %27 = arith.maximumf %23, %26 : vector<4x1024xf32>
    %c7 = arith.constant 7 : index
    %c0_22 = arith.constant 0 : index
    %c0_23 = arith.constant 0 : index
    %28 = vector.load %arg3[%c7, %c0_22, %c0_23] : memref<8x27x1024xbf16, #tpu.memory_space<vmem>>, vector<1x27x1024xbf16>
    %29 = vector.shape_cast %28 : vector<1x27x1024xbf16> to vector<27x1024xbf16>
    %cst_24 = arith.constant dense<0.000000e+00> : vector<4x1024xf32>
    %30 = tpu.matmul %0, %29, %cst_24 {dimension_numbers = #tpu.dot_dimension_numbers<[1], [0], [0], [1], [0, 0, 1, 1], [], []>} : vector<4x27xbf16>, vector<27x1024xbf16>, vector<4x1024xf32> -> vector<4x1024xf32>
    %31 = arith.maximumf %27, %30 : vector<4x1024xf32>
    %c0_25 = arith.constant 0 : index
    %c0_26 = arith.constant 0 : index
    %32 = vector.load %arg2[%c0_25, %c0_26] : memref<4x1xf32, #tpu.memory_space<vmem>>, vector<4x1xf32>
    %33 = vector.broadcast %32 : vector<4x1xf32> to vector<4x1024xf32>
    %34 = arith.addf %31, %33 : vector<4x1024xf32>
    %cst_27 = arith.constant 0.000000e+00 : f32
    %35 = vector.broadcast %cst_27 : f32 to vector<4x1024xf32>
    %36 = arith.maximumf %34, %35 : vector<4x1024xf32>
    %c0_28 = arith.constant 0 : index
    %c0_29 = arith.constant 0 : index
    %37 = vector.load %arg4[%c0_28, %c0_29] : memref<4x1024xf32, #tpu.memory_space<vmem>>, vector<4x1024xf32>
    tpu.vector_store %arg4[%c0_28, %c0_29], %36 {strides = array<i32>} : memref<4x1024xf32, #tpu.memory_space<vmem>>, vector<4x1024xf32>,
    return
  }
  func.func @transform_0(%arg0: i32) -> (i32, i32) {
    %c0_i32 = arith.constant 0 : i32
    %c0_i32_0 = arith.constant 0 : i32
    %c0_i32_1 = arith.constant 0 : i32
    return %c0_i32, %c0_i32_0 : i32, i32
  }
  func.func @transform_1(%arg0: i32) -> (i32, i32) {
    %c0_i32 = arith.constant 0 : i32
    %c0_i32_0 = arith.constant 0 : i32
    %c0_i32_1 = arith.constant 0 : i32
    return %c0_i32, %c0_i32_0 : i32, i32
  }
  func.func @transform_2(%arg0: i32) -> (i32, i32, i32) {
    %c0_i32 = arith.constant 0 : i32
    %c0_i32_0 = arith.constant 0 : i32
    %c0_i32_1 = arith.constant 0 : i32
    return %c0_i32, %c0_i32_0, %arg0 : i32, i32, i32
  }
  func.func @transform_3(%arg0: i32) -> (i32, i32) {
    %c0_i32 = arith.constant 0 : i32
    %c0_i32_0 = arith.constant 0 : i32
    return %c0_i32, %arg0 : i32, i32
  }
}

</mosaic_0001>

<llo_original>
// kernel: tpu_custom_call.1
$region0: #{tpu_custom_call.1}
  #allocation0 [shape = 'u32[]', space=smem, size = 0x4, offset = 0x4, fixed_abs, tag = 'smem constant byte address 0x4 - core index']
  #allocation1 [shape = 'u32[144,128]{1,0:T(1,128)}', space=vmem, size = 0x12000, scoped, tag = 'internal scratch']
  %s0 = inlined_call_operand.vmem [shape: bf16[4,27], index: 0, kind: input, shape index: {}]
  %s1 = inlined_call_operand.vmem [shape: f32[4,1], index: 1, kind: input, shape index: {}]
  %s2 = inlined_call_operand.vmem [shape: bf16[8,27,2048], index: 2, kind: input, shape index: {}]
  %s3 = inlined_call_operand.hbm [shape: f32[4,2048], index: 3, kind: output, shape index: {}]
  %s4 = sld [smem:[#allocation0]]
  $region68: #{tpu_custom_call.1} parent=0
    _
  %s6 = ssub.s32 1, %s4
  %s7 = scalar_select 0, %s6, %s4
  $region1: #{tpu_custom_call.1} parent=0
    #allocation2 [shape = 'u8[1048576]{0}', space=vmem, size = 0x100000, scoped, tag = 'input window, operand 2']
    #allocation3 [shape = 'u8[32768]{0}', space=vmem, size = 0x8000, scoped, tag = 'output window, operand 0']
    #allocation4 [shape = 's32[2]{0}', space=sflag, size = 0x8, scoped, tag = 'scoped memory for tpu_custom_call.1']
    %8 = vsyncpa [#allocation4], 0
    %s9 = scalar_lea.sflag [#allocation4], 1
    %10 = vsyncpa %s9, 0
    loop: start=0, step=1, limit=4
    $region2: #{tpu_custom_call.1} parent=1 // loop_pre_header
      _
    $region3: #{tpu_custom_call.1} parent=1 // loop_header
      %s12 = sphi 0, %s16
      %p13 = scmp.ge.s32.totalorder %s12, 4
      %s20 = sphi 0, %s20
      %s22 = sphi 0, %s20
      %s23 = sphi 0, %s22
      %s37 = sphi 0, %s23
      %s41 = sphi 0, %s41
      %s43 = sphi 0, %s41
      %s44 = sphi 0, %s43
      %s58 = sphi 0, %s44
      %s64 = sphi 0, %s66
      %s67 = sphi 0, %s64
      %s68 = sphi 0, %s67
      %s84 = sphi 0, %s68
      %s90 = sphi 0, %s92
      %s93 = sphi 0, %s90
      %s94 = sphi 0, %s93
      %s110 = sphi 0, %s94
    $region4: #{tpu_custom_call.1} parent=1 // loop_header_branch
      %15 = sbr.rel (%p13) target = $region8
    $region5: #{tpu_custom_call.1} parent=1 // loop_body
      %s17 = ssub.s32 %s12, 1
      %s18 = ssub.s32 %s12, 2
      %s19 = sadd.s32 %s12, 1
      %s21 = sadd.s32 %s20, 1
      %p24 = scmp.eq.s32.totalorder %s12, 1
      %p25 = scmp.ne.s32.totalorder %s20, %s22
      %p26 = scmp.eq.s32.totalorder %s12, 0
      %p27 = por %p25, %p26
      %p28 = scmp.ne.s32.totalorder %s20, %s22
      %p29 = scmp.eq.s32.totalorder %s17, 1
      %p30 = por %p28, %p29
      %p31 = scmp.ne.s32.totalorder %s22, %s23
      %p32 = scmp.eq.s32.totalorder %s17, 0
      %p33 = por %p31, %p32
      %p34 = scmp.ne.s32.totalorder %s22, %s23
      %p35 = scmp.eq.s32.totalorder %s18, 1
      %p36 = por %p34, %p35
      %p38 = scmp.ne.s32.totalorder %s23, %s37
      %p39 = scmp.eq.s32.totalorder %s18, 0
      %p40 = por %p38, %p39
      %s42 = sadd.s32 %s41, 1
      %p45 = scmp.eq.s32.totalorder %s12, 1
      %p46 = scmp.ne.s32.totalorder %s41, %s43
      %p47 = scmp.eq.s32.totalorder %s12, 0
      %p48 = por %p46, %p47
      %p49 = scmp.ne.s32.totalorder %s41, %s43
      %p50 = scmp.eq.s32.totalorder %s17, 1
      %p51 = por %p49, %p50
      %p52 = scmp.ne.s32.totalorder %s43, %s44
      %p53 = scmp.eq.s32.totalorder %s17, 0
      %p54 = por %p52, %p53
      %p55 = scmp.ne.s32.totalorder %s43, %s44
      %p56 = scmp.eq.s32.totalorder %s18, 1
      %p57 = por %p55, %p56
      %p59 = scmp.ne.s32.totalorder %s44, %s58
      %p60 = scmp.eq.s32.totalorder %s18, 0
      %p61 = por %p59, %p60
      %s62 = ssub.s32 %s12, %s19
      %p63 = scmp.eq.s32.totalorder %s62, 0
      %s65 = sadd.s32 %s64, 1
      %s66 = scalar_select %p63, %s64, %s65
      %p69 = pneg %p63
      %p70 = scmp.eq.s32.totalorder %s12, 1
      %p71 = por %p69, %p70
      %p72 = scmp.ne.s32.totalorder %s64, %s67
      %p73 = scmp.eq.s32.totalorder %s12, 0
      %p74 = por %p72, %p73
      %p75 = scmp.ne.s32.totalorder %s64, %s67
      %p76 = scmp.eq.s32.totalorder %s17, 1
      %p77 = por %p75, %p76
      %p78 = scmp.ne.s32.totalorder %s67, %s68
      %p79 = scmp.eq.s32.totalorder %s17, 0
      %p80 = por %p78, %p79
      %p81 = scmp.ne.s32.totalorder %s67, %s68
      %p82 = scmp.eq.s32.totalorder %s18, 1
      %p83 = por %p81, %p82
      %p85 = scmp.ne.s32.totalorder %s68, %s84
      %p86 = scmp.eq.s32.totalorder %s18, 0
      %p87 = por %p85, %p86
      %s88 = ssub.s32 %s12, %s19
      %p89 = scmp.eq.s32.totalorder %s88, 0
      %s91 = sadd.s32 %s90, 1
      %s92 = scalar_select %p89, %s90, %s91
      %p95 = pneg %p89
      %p96 = scmp.eq.s32.totalorder %s12, 1
      %p97 = por %p95, %p96
      %p98 = scmp.ne.s32.totalorder %s90, %s93
      %p99 = scmp.eq.s32.totalorder %s12, 0
      %p100 = por %p98, %p99
      %p101 = scmp.ne.s32.totalorder %s90, %s93
      %p102 = scmp.eq.s32.totalorder %s17, 1
      %p103 = por %p101, %p102
      %p104 = scmp.ne.s32.totalorder %s93, %s94
      %p105 = scmp.eq.s32.totalorder %s17, 0
      %p106 = por %p104, %p105
      %p107 = scmp.ne.s32.totalorder %s93, %s94
      %p108 = scmp.eq.s32.totalorder %s18, 1
      %p109 = por %p107, %p108
      %p111 = scmp.ne.s32.totalorder %s94, %s110
      %p112 = scmp.eq.s32.totalorder %s18, 0
      %p113 = por %p111, %p112
      %p114 = scmp.le.s32.totalorder 1, %s12
      %p115 = scmp.lt.s32.totalorder %s12, 3
      %p116 = pnand %p114, %p115
      %p117 = pneg %p116
      // Predicated region
      $region9: #{tpu_custom_call.1} parent=5 // pred_check
        _
      $region10: #{tpu_custom_call.1} parent=5 // pred_check_branch
        %119 = sbr.rel (%p116) target = $region12
      $region11: #{tpu_custom_call.1} parent=5 // pred_region
        %s120 = ssub.s32 %s12, 1
        // Predicated region
        $region13: #{tpu_custom_call.1} parent=11 // pred_check
          %p121 = pneg %p33
        $region14: #{tpu_custom_call.1} parent=11 // pred_check_branch
          %123 = sbr.rel (%p121) target = $region16
        $region15: #{tpu_custom_call.1} parent=11 // pred_region
          _
        $region16: #{tpu_custom_call.1} parent=11 // pred_fallthru
          _
        // Predicated region
        $region17: #{tpu_custom_call.1} parent=11 // pred_check
          %p124 = pneg %p54
        $region18: #{tpu_custom_call.1} parent=11 // pred_check_branch
          %126 = sbr.rel (%p124) target = $region20
        $region19: #{tpu_custom_call.1} parent=11 // pred_region
          _
        $region20: #{tpu_custom_call.1} parent=11 // pred_fallthru
          _
      $region12: #{tpu_custom_call.1} parent=5 // pred_fallthru
        _
      %p127 = scmp.lt.s32.totalorder %s12, 2
      // Predicated region
      $region21: #{tpu_custom_call.1} parent=5 // pred_check
        %p128 = pneg %p127
      $region22: #{tpu_custom_call.1} parent=5 // pred_check_branch
        %130 = sbr.rel (%p128) target = $region24
      $region23: #{tpu_custom_call.1} parent=5 // pred_region
        // Predicated region
        $region25: #{tpu_custom_call.1} parent=23 // pred_check
          %p131 = pneg %p74
        $region26: #{tpu_custom_call.1} parent=23 // pred_check_branch
          %133 = sbr.rel (%p131) target = $region28
        $region27: #{tpu_custom_call.1} parent=23 // pred_region
          %s134 = sand.u32 %s64, 1
          %s135 = sand.u32 %s64, 1
          %s136 = smul.addr %s135, 1024
          %s137 = scalar_lea.vmem [#allocation2], %s136
          %s138 = smul.u32 8, %s12
          %s139 = smul.addr %s138, 4
          %s140 = scalar_lea.vmem %s2, %s139
          // Predicated region
          $region29: #{tpu_custom_call.1} parent=27 // pred_check
            _
          $region30: #{tpu_custom_call.1} parent=27 // pred_check_branch
            %142 = sbr.rel (0) target = $region32
          $region31: #{tpu_custom_call.1} parent=27 // pred_region
            // Predicated region
            $region33: #{tpu_custom_call.1} parent=31 // pred_check
              _
            $region34: #{tpu_custom_call.1} parent=31 // pred_check_branch
              %144 = sbr.rel (0) target = $region36
            $region35: #{tpu_custom_call.1} parent=31 // pred_region
              loop: start=0, step=1, limit=1
              $region37: #{tpu_custom_call.1} parent=35 // loop_pre_header
                _
              $region38: #{tpu_custom_call.1} parent=35 // loop_header
                %s146 = sphi 0, %s150
                %p147 = scmp.ge.s32.totalorder %s146, 1
                %s151 = sphi %s140, %s140
                %s152 = sphi %s137, %s137
              $region39: #{tpu_custom_call.1} parent=35 // loop_header_branch
                %149 = sbr.rel (%p147) target = $region43
              $region40: #{tpu_custom_call.1} parent=35 // loop_body
                %v153 = vld [vmem:[%s151] sm:$0xff]
                %154 = vst [vmem:[%s152] sm:$0xff] %v153
                %v155 = vld [vmem:[%s151 + $0x8] sm:$0xff]
                %156 = vst [vmem:[%s152 + $0x8] sm:$0xff] %v155
                %v157 = vld [vmem:[%s151 + $0x10] sm:$0xff]
                %158 = vst [vmem:[%s152 + $0x10] sm:$0xff] %v157
                %v159 = vld [vmem:[%s151 + $0x18] sm:$0xff]
                %160 = vst [vmem:[%s152 + $0x18] sm:$0xff] %v159
                %v161 = vld [vmem:[%s151 + $0x40] sm:$0xff]
                %162 = vst [vmem:[%s152 + $0x20] sm:$0xff] %v161
                %v163 = vld [vmem:[%s151 + $0x48] sm:$0xff]
                %164 = vst [vmem:[%s152 + $0x28] sm:$0xff] %v163
                %v165 = vld [vmem:[%s151 + $0x50] sm:$0xff]
                %166 = vst [vmem:[%s152 + $0x30] sm:$0xff] %v165
                %v167 = vld [vmem:[%s151 + $0x58] sm:$0xff]
                %168 = vst [vmem:[%s152 + $0x38] sm:$0xff] %v167
                %v169 = vld [vmem:[%s151 + $0x80] sm:$0xff]
                %170 = vst [vmem:[%s152 + $0x40] sm:$0xff] %v169
                %v171 = vld [vmem:[%s151 + $0x88] sm:$0xff]
                %172 = vst [vmem:[%s152 + $0x48] sm:$0xff] %v171
                %v173 = vld [vmem:[%s151 + $0x90] sm:$0xff]
                %174 = vst [vmem:[%s152 + $0x50] sm:$0xff] %v173
                %v175 = vld [vmem:[%s151 + $0x98] sm:$0xff]
                %176 = vst [vmem:[%s152 + $0x58] sm:$0xff] %v175
                %v177 = vld [vmem:[%s151 + $0xc0] sm:$0xff]
                %178 = vst [vmem:[%s152 + $0x60] sm:$0xff] %v177
                %v179 = vld [vmem:[%s151 + $0xc8] sm:$0xff]
                %180 = vst [vmem:[%s152 + $0x68] sm:$0xff] %v179
                %v181 = vld [vmem:[%s151 + $0xd0] sm:$0xff]
                %182 = vst [vmem:[%s152 + $0x70] sm:$0xff] %v181
                %v183 = vld [vmem:[%s151 + $0xd8] sm:$0xff]
                %184 = vst [vmem:[%s152 + $0x78] sm:$0xff] %v183
                %v185 = vld [vmem:[%s151 + $0x100] sm:$0xff]
                %186 = vst [vmem:[%s152 + $0x80] sm:$0xff] %v185
                %v187 = vld [vmem:[%s151 + $0x108] sm:$0xff]
                %188 = vst [vmem:[%s152 + $0x88] sm:$0xff] %v187
                %v189 = vld [vmem:[%s151 + $0x110] sm:$0xff]
                %190 = vst [vmem:[%s152 + $0x90] sm:$0xff] %v189
                %v191 = vld [vmem:[%s151 + $0x118] sm:$0xff]
                %192 = vst [vmem:[%s152 + $0x98] sm:$0xff] %v191
                %v193 = vld [vmem:[%s151 + $0x140] sm:$0xff]
                %194 = vst [vmem:[%s152 + $0xa0] sm:$0xff] %v193
                %v195 = vld [vmem:[%s151 + $0x148] sm:$0xff]
                %196 = vst [vmem:[%s152 + $0xa8] sm:$0xff] %v195
                %v197 = vld [vmem:[%s151 + $0x150] sm:$0xff]
                %198 = vst [vmem:[%s152 + $0xb0] sm:$0xff] %v197
                %v199 = vld [vmem:[%s151 + $0x158] sm:$0xff]
                %200 = vst [vmem:[%s152 + $0xb8] sm:$0xff] %v199
                %v201 = vld [vmem:[%s151 + $0x180] sm:$0xff]
                %202 = vst [vmem:[%s152 + $0xc0] sm:$0xff] %v201
                %v203 = vld [vmem:[%s151 + $0x188] sm:$0xff]
                %204 = vst [vmem:[%s152 + $0xc8] sm:$0xff] %v203
                %v205 = vld [vmem:[%s151 + $0x190] sm:$0xff]
                %206 = vst [vmem:[%s152 + $0xd0] sm:$0xff] %v205
                %v207 = vld [vmem:[%s151 + $0x198] sm:$0xff]
                %208 = vst [vmem:[%s152 + $0xd8] sm:$0xff] %v207
                %v209 = vld [vmem:[%s151 + $0x1c0] sm:$0xff]
                %210 = vst [vmem:[%s152 + $0xe0] sm:$0xff] %v209
                %v211 = vld [vmem:[%s151 + $0x1c8] sm:$0xff]
                %212 = vst [vmem:[%s152 + $0xe8] sm:$0xff] %v211
                %v213 = vld [vmem:[%s151 + $0x1d0] sm:$0xff]
                %214 = vst [vmem:[%s152 + $0xf0] sm:$0xff] %v213
                %v215 = vld [vmem:[%s151 + $0x1d8] sm:$0xff]
                %216 = vst [vmem:[%s152 + $0xf8] sm:$0xff] %v215
                %v217 = vld [vmem:[%s151 + $0x200] sm:$0xff]
                %218 = vst [vmem:[%s152 + $0x100] sm:$0xff] %v217
                %v219 = vld [vmem:[%s151 + $0x208] sm:$0xff]
                %220 = vst [vmem:[%s152 + $0x108] sm:$0xff] %v219
                %v221 = vld [vmem:[%s151 + $0x210] sm:$0xff]
                %222 = vst [vmem:[%s152 + $0x110] sm:$0xff] %v221
                %v223 = vld [vmem:[%s151 + $0x218] sm:$0xff]
                %224 = vst [vmem:[%s152 + $0x118] sm:$0xff] %v223
                %v225 = vld [vmem:[%s151 + $0x240] sm:$0xff]
                %226 = vst [vmem:[%s152 + $0x120] sm:$0xff] %v225
                %v227 = vld [vmem:[%s151 + $0x248] sm:$0xff]
                %228 = vst [vmem:[%s152 + $0x128] sm:$0xff] %v227
                %v229 = vld [vmem:[%s151 + $0x250] sm:$0xff]
                %230 = vst [vmem:[%s152 + $0x130] sm:$0xff] %v229
                %v231 = vld [vmem:[%s151 + $0x258] sm:$0xff]
                %232 = vst [vmem:[%s152 + $0x138] sm:$0xff] %v231
                %v233 = vld [vmem:[%s151 + $0x280] sm:$0xff]
                %234 = vst [vmem:[%s152 + $0x140] sm:$0xff] %v233
                %v235 = vld [vmem:[%s151 + $0x288] sm:$0xff]
                %236 = vst [vmem:[%s152 + $0x148] sm:$0xff] %v235
                %v237 = vld [vmem:[%s151 + $0x290] sm:$0xff]
                %238 = vst [vmem:[%s152 + $0x150] sm:$0xff] %v237
                %v239 = vld [vmem:[%s151 + $0x298] sm:$0xff]
                %240 = vst [vmem:[%s152 + $0x158] sm:$0xff] %v239
                %v241 = vld [vmem:[%s151 + $0x2c0] sm:$0xff]
                %242 = vst [vmem:[%s152 + $0x160] sm:$0xff] %v241
                %v243 = vld [vmem:[%s151 + $0x2c8] sm:$0xff]
                %244 = vst [vmem:[%s152 + $0x168] sm:$0xff] %v243
                %v245 = vld [vmem:[%s151 + $0x2d0] sm:$0xff]
                %246 = vst [vmem:[%s152 + $0x170] sm:$0xff] %v245
                %v247 = vld [vmem:[%s151 + $0x2d8] sm:$0xff]
                %248 = vst [vmem:[%s152 + $0x178] sm:$0xff] %v247
                %v249 = vld [vmem:[%s151 + $0x300] sm:$0xff]
                %250 = vst [vmem:[%s152 + $0x180] sm:$0xff] %v249
                %v251 = vld [vmem:[%s151 + $0x308] sm:$0xff]
                %252 = vst [vmem:[%s152 + $0x188] sm:$0xff] %v251
                %v253 = vld [vmem:[%s151 + $0x310] sm:$0xff]
                %254 = vst [vmem:[%s152 + $0x190] sm:$0xff] %v253
                %v255 = vld [vmem:[%s151 + $0x318] sm:$0xff]
                %256 = vst [vmem:[%s152 + $0x198] sm:$0xff] %v255
                %v257 = vld [vmem:[%s151 + $0x340] sm:$0xff]
                %258 = vst [vmem:[%s152 + $0x1a0] sm:$0xff] %v257
                %v259 = vld [vmem:[%s151 + $0x348] sm:$0xff]
                %260 = vst [vmem:[%s152 + $0x1a8] sm:$0xff] %v259
                %v261 = vld [vmem:[%s151 + $0x350] sm:$0xff]
                %262 = vst [vmem:[%s152 + $0x1b0] sm:$0xff] %v261
                %v263 = vld [vmem:[%s151 + $0x358] sm:$0xff]
                %264 = vst [vmem:[%s152 + $0x1b8] sm:$0xff] %v263
                %v265 = vld [vmem:[%s151 + $0x380] sm:$0xff]
                %266 = vst [vmem:[%s152 + $0x1c0] sm:$0xff] %v265
                %v267 = vld [vmem:[%s151 + $0x388] sm:$0xff]
                %268 = vst [vmem:[%s152 + $0x1c8] sm:$0xff] %v267
                %v269 = vld [vmem:[%s151 + $0x390] sm:$0xff]
                %270 = vst [vmem:[%s152 + $0x1d0] sm:$0xff] %v269
                %v271 = vld [vmem:[%s151 + $0x398] sm:$0xff]
                %272 = vst [vmem:[%s152 + $0x1d8] sm:$0xff] %v271
                %v273 = vld [vmem:[%s151 + $0x3c0] sm:$0xff]
                %274 = vst [vmem:[%s152 + $0x1e0] sm:$0xff] %v273
                %v275 = vld [vmem:[%s151 + $0x3c8] sm:$0xff]
                %276 = vst [vmem:[%s152 + $0x1e8] sm:$0xff] %v275
                %v277 = vld [vmem:[%s151 + $0x3d0] sm:$0xff]
                %278 = vst [vmem:[%s152 + $0x1f0] sm:$0xff] %v277
                %v279 = vld [vmem:[%s151 + $0x3d8] sm:$0xff]
                %280 = vst [vmem:[%s152 + $0x1f8] sm:$0xff] %v279
                %v281 = vld [vmem:[%s151 + $0x400] sm:$0xff]
                %282 = vst [vmem:[%s152 + $0x200] sm:$0xff] %v281
                %v283 = vld [vmem:[%s151 + $0x408] sm:$0xff]
                %284 = vst [vmem:[%s152 + $0x208] sm:$0xff] %v283
                %v285 = vld [vmem:[%s151 + $0x410] sm:$0xff]
                %286 = vst [vmem:[%s152 + $0x210] sm:$0xff] %v285
                %v287 = vld [vmem:[%s151 + $0x418] sm:$0xff]
                %288 = vst [vmem:[%s152 + $0x218] sm:$0xff] %v287
                %v289 = vld [vmem:[%s151 + $0x440] sm:$0xff]
                %290 = vst [vmem:[%s152 + $0x220] sm:$0xff] %v289
                %v291 = vld [vmem:[%s151 + $0x448] sm:$0xff]
                %292 = vst [vmem:[%s152 + $0x228] sm:$0xff] %v291
                %v293 = vld [vmem:[%s151 + $0x450] sm:$0xff]
                %294 = vst [vmem:[%s152 + $0x230] sm:$0xff] %v293
                %v295 = vld [vmem:[%s151 + $0x458] sm:$0xff]
                %296 = vst [vmem:[%s152 + $0x238] sm:$0xff] %v295
                %v297 = vld [vmem:[%s151 + $0x480] sm:$0xff]
                %298 = vst [vmem:[%s152 + $0x240] sm:$0xff] %v297
                %v299 = vld [vmem:[%s151 + $0x488] sm:$0xff]
                %300 = vst [vmem:[%s152 + $0x248] sm:$0xff] %v299
                %v301 = vld [vmem:[%s151 + $0x490] sm:$0xff]
                %302 = vst [vmem:[%s152 + $0x250] sm:$0xff] %v301
                %v303 = vld [vmem:[%s151 + $0x498] sm:$0xff]
                %304 = vst [vmem:[%s152 + $0x258] sm:$0xff] %v303
                %v305 = vld [vmem:[%s151 + $0x4c0] sm:$0xff]
                %306 = vst [vmem:[%s152 + $0x260] sm:$0xff] %v305
                %v307 = vld [vmem:[%s151 + $0x4c8] sm:$0xff]
                %308 = vst [vmem:[%s152 + $0x268] sm:$0xff] %v307
                %v309 = vld [vmem:[%s151 + $0x4d0] sm:$0xff]
                %310 = vst [vmem:[%s152 + $0x270] sm:$0xff] %v309
                %v311 = vld [vmem:[%s151 + $0x4d8] sm:$0xff]
                %312 = vst [vmem:[%s152 + $0x278] sm:$0xff] %v311
                %v313 = vld [vmem:[%s151 + $0x500] sm:$0xff]
                %314 = vst [vmem:[%s152 + $0x280] sm:$0xff] %v313
                %v315 = vld [vmem:[%s151 + $0x508] sm:$0xff]
                %316 = vst [vmem:[%s152 + $0x288] sm:$0xff] %v315
                %v317 = vld [vmem:[%s151 + $0x510] sm:$0xff]
                %318 = vst [vmem:[%s152 + $0x290] sm:$0xff] %v317
                %v319 = vld [vmem:[%s151 + $0x518] sm:$0xff]
                %320 = vst [vmem:[%s152 + $0x298] sm:$0xff] %v319
                %v321 = vld [vmem:[%s151 + $0x540] sm:$0xff]
                %322 = vst [vmem:[%s152 + $0x2a0] sm:$0xff] %v321
                %v323 = vld [vmem:[%s151 + $0x548] sm:$0xff]
                %324 = vst [vmem:[%s152 + $0x2a8] sm:$0xff] %v323
                %v325 = vld [vmem:[%s151 + $0x550] sm:$0xff]
                %326 = vst [vmem:[%s152 + $0x2b0] sm:$0xff] %v325
                %v327 = vld [vmem:[%s151 + $0x558] sm:$0xff]
                %328 = vst [vmem:[%s152 + $0x2b8] sm:$0xff] %v327
                %v329 = vld [vmem:[%s151 + $0x580] sm:$0xff]
                %330 = vst [vmem:[%s152 + $0x2c0] sm:$0xff] %v329
                %v331 = vld [vmem:[%s151 + $0x588] sm:$0xff]
                %332 = vst [vmem:[%s152 + $0x2c8] sm:$0xff] %v331
                %v333 = vld [vmem:[%s151 + $0x590] sm:$0xff]
                %334 = vst [vmem:[%s152 + $0x2d0] sm:$0xff] %v333
                %v335 = vld [vmem:[%s151 + $0x598] sm:$0xff]
                %336 = vst [vmem:[%s152 + $0x2d8] sm:$0xff] %v335
                %v337 = vld [vmem:[%s151 + $0x5c0] sm:$0xff]
                %338 = vst [vmem:[%s152 + $0x2e0] sm:$0xff] %v337
                %v339 = vld [vmem:[%s151 + $0x5c8] sm:$0xff]
                %340 = vst [vmem:[%s152 + $0x2e8] sm:$0xff] %v339
                %v341 = vld [vmem:[%s151 + $0x5d0] sm:$0xff]
                %342 = vst [vmem:[%s152 + $0x2f0] sm:$0xff] %v341
                %v343 = vld [vmem:[%s151 + $0x5d8] sm:$0xff]
                %344 = vst [vmem:[%s152 + $0x2f8] sm:$0xff] %v343
                %v345 = vld [vmem:[%s151 + $0x600] sm:$0xff]
                %346 = vst [vmem:[%s152 + $0x300] sm:$0xff] %v345
                %v347 = vld [vmem:[%s151 + $0x608] sm:$0xff]
                %348 = vst [vmem:[%s152 + $0x308] sm:$0xff] %v347
                %v349 = vld [vmem:[%s151 + $0x610] sm:$0xff]
                %350 = vst [vmem:[%s152 + $0x310] sm:$0xff] %v349
                %v351 = vld [vmem:[%s151 + $0x618] sm:$0xff]
                %352 = vst [vmem:[%s152 + $0x318] sm:$0xff] %v351
                %v353 = vld [vmem:[%s151 + $0x640] sm:$0xff]
                %354 = vst [vmem:[%s152 + $0x320] sm:$0xff] %v353
                %v355 = vld [vmem:[%s151 + $0x648] sm:$0xff]
                %356 = vst [vmem:[%s152 + $0x328] sm:$0xff] %v355
                %v357 = vld [vmem:[%s151 + $0x650] sm:$0xff]
                %358 = vst [vmem:[%s152 + $0x330] sm:$0xff] %v357
                %v359 = vld [vmem:[%s151 + $0x658] sm:$0xff]
                %360 = vst [vmem:[%s152 + $0x338] sm:$0xff] %v359
                %v361 = vld [vmem:[%s151 + $0x680] sm:$0xff]
                %362 = vst [vmem:[%s152 + $0x340] sm:$0xff] %v361
                %v363 = vld [vmem:[%s151 + $0x688] sm:$0xff]
                %364 = vst [vmem:[%s152 + $0x348] sm:$0xff] %v363
                %v365 = vld [vmem:[%s151 + $0x690] sm:$0xff]
                %366 = vst [vmem:[%s152 + $0x350] sm:$0xff] %v365
                %v367 = vld [vmem:[%s151 + $0x698] sm:$0xff]
                %368 = vst [vmem:[%s152 + $0x358] sm:$0xff] %v367
                %v369 = vld [vmem:[%s151 + $0x6c0] sm:$0xff]
                %370 = vst [vmem:[%s152 + $0x360] sm:$0xff] %v369
                %v371 = vld [vmem:[%s151 + $0x6c8] sm:$0xff]
                %372 = vst [vmem:[%s152 + $0x368] sm:$0xff] %v371
                %v373 = vld [vmem:[%s151 + $0x6d0] sm:$0xff]
                %374 = vst [vmem:[%s152 + $0x370] sm:$0xff] %v373
                %v375 = vld [vmem:[%s151 + $0x6d8] sm:$0xff]
                %376 = vst [vmem:[%s152 + $0x378] sm:$0xff] %v375
                %v377 = vld [vmem:[%s151 + $0x700] sm:$0xff]
                %378 = vst [vmem:[%s152 + $0x380] sm:$0xff] %v377
                %v379 = vld [vmem:[%s151 + $0x708] sm:$0xff]
                %380 = vst [vmem:[%s152 + $0x388] sm:$0xff] %v379
                %v381 = vld [vmem:[%s151 + $0x710] sm:$0xff]
                %382 = vst [vmem:[%s152 + $0x390] sm:$0xff] %v381
                %v383 = vld [vmem:[%s151 + $0x718] sm:$0xff]
                %384 = vst [vmem:[%s152 + $0x398] sm:$0xff] %v383
                %v385 = vld [vmem:[%s151 + $0x740] sm:$0xff]
                %386 = vst [vmem:[%s152 + $0x3a0] sm:$0xff] %v385
                %v387 = vld [vmem:[%s151 + $0x748] sm:$0xff]
                %388 = vst [vmem:[%s152 + $0x3a8] sm:$0xff] %v387
                %v389 = vld [vmem:[%s151 + $0x750] sm:$0xff]
                %390 = vst [vmem:[%s152 + $0x3b0] sm:$0xff] %v389
                %v391 = vld [vmem:[%s151 + $0x758] sm:$0xff]
                %392 = vst [vmem:[%s152 + $0x3b8] sm:$0xff] %v391
                %v393 = vld [vmem:[%s151 + $0x780] sm:$0xff]
                %394 = vst [vmem:[%s152 + $0x3c0] sm:$0xff] %v393
                %v395 = vld [vmem:[%s151 + $0x788] sm:$0xff]
                %396 = vst [vmem:[%s152 + $0x3c8] sm:$0xff] %v395
                %v397 = vld [vmem:[%s151 + $0x790] sm:$0xff]
                %398 = vst [vmem:[%s152 + $0x3d0] sm:$0xff] %v397
                %v399 = vld [vmem:[%s151 + $0x798] sm:$0xff]
                %400 = vst [vmem:[%s152 + $0x3d8] sm:$0xff] %v399
                %v401 = vld [vmem:[%s151 + $0x7c0] sm:$0xff]
                %402 = vst [vmem:[%s152 + $0x3e0] sm:$0xff] %v401
                %v403 = vld [vmem:[%s151 + $0x7c8] sm:$0xff]
                %404 = vst [vmem:[%s152 + $0x3e8] sm:$0xff] %v403
                %v405 = vld [vmem:[%s151 + $0x7d0] sm:$0xff]
                %406 = vst [vmem:[%s152 + $0x3f0] sm:$0xff] %v405
                %v407 = vld [vmem:[%s151 + $0x7d8] sm:$0xff]
                %408 = vst [vmem:[%s152 + $0x3f8] sm:$0xff] %v407
              $region41: #{tpu_custom_call.1} parent=35 // loop_footer
                %s150 = sadd.s32 1, %s146
              $region42: #{tpu_custom_call.1} parent=35 // loop_footer_branch
                %145 = sbr.rel target = $region38
              $region43: #{tpu_custom_call.1} parent=35 // loop_exit
                _
            $region36: #{tpu_custom_call.1} parent=31 // pred_fallthru
              _
            // Predicated region
            $region44: #{tpu_custom_call.1} parent=31 // pred_check
              _
            $region45: #{tpu_custom_call.1} parent=31 // pred_check_branch
              %410 = sbr.rel target = $region47
            $region46: #{tpu_custom_call.1} parent=31 // pred_region
              _
            $region47: #{tpu_custom_call.1} parent=31 // pred_fallthru
              _
          $region32: #{tpu_custom_call.1} parent=27 // pred_fallthru
            _
          %411 = vnop
        $region28: #{tpu_custom_call.1} parent=23 // pred_fallthru
          _
      $region24: #{tpu_custom_call.1} parent=5 // pred_fallthru
        _
      %p412 = scmp.le.s32.totalorder 1, %s12
      %p413 = scmp.lt.s32.totalorder %s12, 3
      %p414 = pnand %p412, %p413
      %p415 = pneg %p414
      // Predicated region
      $region48: #{tpu_custom_call.1} parent=5 // pred_check
        _
      $region49: #{tpu_custom_call.1} parent=5 // pred_check_branch
        %417 = sbr.rel (%p414) target = $region51
      $region50: #{tpu_custom_call.1} parent=5 // pred_region
        %s418 = ssub.s32 %s12, 1
        %s419 = sand.u32 %s67, 1
        %s420 = sand.u32 %s67, 1
        %s421 = smul.addr %s420, 1024
        %s422 = scalar_lea.vmem [#allocation2], %s421
        // Predicated region
        $region52: #{tpu_custom_call.1} parent=50 // pred_check
          %p423 = pneg %p80
        $region53: #{tpu_custom_call.1} parent=50 // pred_check_branch
          %425 = sbr.rel (%p423) target = $region55
        $region54: #{tpu_custom_call.1} parent=50 // pred_region
          _
        $region55: #{tpu_custom_call.1} parent=50 // pred_fallthru
          _
        %p426 = pneg %p33
        %p427 = pneg %p30
        %p428 = pneg %p54
        %p429 = pneg %p51
        %s430 = sand.u32 %s67, 1
        %s431 = sand.u32 %s67, 1
        %s432 = smul.addr %s431, 1024
        %s433 = scalar_lea.vmem [#allocation2], %s432
        %p434 = pneg %p80
        %p435 = pneg %p77
        %p436 = pneg %p106
        %p437 = pneg %p103
        %s438 = sand.u32 %s93, 1
        %s439 = scalar_lea.sflag [#allocation4], %s438
        %s440 = sand.u32 %s93, 1
        %s441 = smul.addr %s440, 32
        %s442 = scalar_lea.vmem [#allocation3], %s441
        %s443 = smul.u32 8, %s17
        %s444 = smul.u32 8, %s17
        %v446 = vld [vmem:[%s0] sm:$0x3]
        %v447 = vld [vmem:[%s422] sm:$0xff]
        %v448 = vld [vmem:[%s422 + $0x8] sm:$0xff]
        %v449 = vld [vmem:[%s422 + $0x10] sm:$0xff]
        %v450 = vld [vmem:[%s422 + $0x18] sm:$0xff]
        %v451 = vld [vmem:[%s422 + $0x20] sm:$0xff]
        %v452 = vld [vmem:[%s422 + $0x28] sm:$0xff]
        %v453 = vld [vmem:[%s422 + $0x30] sm:$0xff]
        %v454 = vld [vmem:[%s422 + $0x38] sm:$0xff]
        %v455 = vld [vmem:[%s422 + $0x40] sm:$0xff]
        %v456 = vld [vmem:[%s422 + $0x48] sm:$0xff]
        %v457 = vld [vmem:[%s422 + $0x50] sm:$0xff]
        %v458 = vld [vmem:[%s422 + $0x58] sm:$0xff]
        %v459 = vld [vmem:[%s422 + $0x60] sm:$0x33]
        %v460 = vld [vmem:[%s422 + $0x68] sm:$0x33]
        %v461 = vld [vmem:[%s422 + $0x70] sm:$0x33]
        %v462 = vld [vmem:[%s422 + $0x78] sm:$0x33]
        %v479 = vunpack.c.l.b16 %v447
        %v480 = vunpack.c.h.b16 %v447
        %v481 = vunpack.c.l.b16 %v448
        %v482 = vunpack.c.h.b16 %v448
        %v483 = vunpack.c.l.b16 %v449
        %v484 = vunpack.c.h.b16 %v449
        %v485 = vunpack.c.l.b16 %v450
        %v486 = vunpack.c.h.b16 %v450
        %v487 = vunpack.c.l.b16 %v451
        %v488 = vunpack.c.h.b16 %v451
        %v489 = vunpack.c.l.b16 %v452
        %v490 = vunpack.c.h.b16 %v452
        %v491 = vunpack.c.l.b16 %v453
        %v492 = vunpack.c.h.b16 %v453
        %v493 = vunpack.c.l.b16 %v454
        %v494 = vunpack.c.h.b16 %v454
        %v495 = vunpack.c.l.b16 %v455
        %v496 = vunpack.c.h.b16 %v455
        %v497 = vunpack.c.l.b16 %v456
        %v498 = vunpack.c.h.b16 %v456
        %v499 = vunpack.c.l.b16 %v457
        %v500 = vunpack.c.h.b16 %v457
        %v501 = vunpack.c.l.b16 %v458
        %v502 = vunpack.c.h.b16 %v458
        %v503 = vunpack.c.l.b16 %v459
        %v504 = vunpack.c.h.b16 %v459
        %v505 = vunpack.c.l.b16 %v460
        %v506 = vunpack.c.h.b16 %v460
        %v507 = vunpack.c.l.b16 %v461
        %v508 = vunpack.c.h.b16 %v461
        %v509 = vunpack.c.l.b16 %v462
        %v510 = vunpack.c.h.b16 %v462
        %v511 = vpack.c.b16 %v487, %v479
        %v512 = vpack.c.b16 %v488, %v480
        %v513 = vpack.c.b16 %v489, %v481
        %v514 = vpack.c.b16 %v490, %v482
        %v515 = vpack.c.b16 %v491, %v483
        %v516 = vpack.c.b16 %v492, %v484
        %v517 = vpack.c.b16 %v493, %v485
        %v518 = vpack.c.b16 %v494, %v486
        %v519 = vpack.c.b16 %v503, %v495
        %v520 = vpack.c.b16 %v504, %v496
        %v521 = vpack.c.b16 %v505, %v497
        %v522 = vpack.c.b16 %v506, %v498
        %v523 = vpack.c.b16 %v507, %v499
        %v524 = vpack.c.b16 %v508, %v500
        %v525 = vpack.c.b16 %v509, %v501
        %v526 = vpack.c.b16 %v510, %v502
        %vm535 = vcmask 220160
        %v537 = vsel %vm535, %v446, 0
        %vm539 = vcmask 1044480
        %vm540 = vcmask 1045504
        %v541 = vsel %vm539, 4294967295, 65535
        %v542 = vsel %vm540, %v541, 0
        %v544 = vand.u32 %v519, %v542
        %v547 = vand.u32 %v520, %v542
        %v550 = vand.u32 %v521, %v542
        %v553 = vand.u32 %v522, %v542
        %v556 = vand.u32 %v523, %v542
        %v559 = vand.u32 %v524, %v542
        %v562 = vand.u32 %v525, %v542
        %v565 = vand.u32 %v526, %v542
        %567 = vmatprep.subr.bf16.mxu0 %v512
        %568 = vmatpush1.bf16.msra.mxu0 %v511
        %569 = vmatprep.subr.bf16.mxu0 %v547
        %570 = vmatpush1.bf16.msra.mxu0 %v544
        %571 = vmatprep.subr.bf16.mxu0 0
        %572 = vmatpush1.bf16.msra.mxu0 0
        %573 = vmatprep.subr.bf16.mxu0 0
        %574 = vmatpush1.bf16.msra.mxu0 0
        %575 = vmatprep.subr.bf16.mxu0 0
        %576 = vmatpush1.bf16.msra.mxu0 0
        %577 = vmatprep.subr.bf16.mxu0 0
        %578 = vmatpush1.bf16.msra.mxu0 0
        %579 = vmatprep.subr.bf16.mxu0 0
        %580 = vmatpush1.bf16.msra.mxu0 0
        %581 = vmatprep.subr.bf16.mxu0 0
        %582 = vmatpush1.bf16.msra.mxu0 0
        %583 = vmatprep.subr.bf16.mxu0 0
        %584 = vmatpush1.bf16.msra.mxu0 0
        %585 = vmatprep.subr.bf16.mxu0 0
        %586 = vmatpush1.bf16.msra.mxu0 0
        %587 = vmatprep.subr.bf16.mxu0 0
        %588 = vmatpush1.bf16.msra.mxu0 0
        %589 = vmatprep.subr.bf16.mxu0 0
        %590 = vmatpush1.bf16.msra.mxu0 0
        %591 = vmatprep.subr.bf16.mxu0 0
        %592 = vmatpush1.bf16.msra.mxu0 0
        %593 = vmatprep.subr.bf16.mxu0 0
        %594 = vmatpush1.bf16.msra.mxu0 0
        %595 = vmatprep.subr.bf16.mxu0 0
        %596 = vmatpush1.bf16.msra.mxu0 0
        %597 = vmatprep.subr.bf16.mxu0 0
        %598 = vmatpush1.bf16.msra.mxu0 0
        %599 = vmatprep.mubr.bf16.mxu0 0
        %600 = vmatmul.mubr.bf16.gmra.mrb[0].mxu0 %v537
        %v601 = vpop.f32.mrb[0].mxu0
        %v602 = vadd.f32 0.0, %v601
        %v603 = vpop.f32.mrb[0].mxu0
        %v604 = vadd.f32 0.0, %v603
        %v605 = vpop.f32.mrb[0].mxu0
        %v606 = vpop.f32.mrb[0].mxu0
        %607 = vdwg.mxu0
        %608 = vmatprep.subr.bf16.mxu0 %v514
        %609 = vmatpush1.bf16.msra.mxu0 %v513
        %610 = vmatprep.subr.bf16.mxu0 %v553
        %611 = vmatpush1.bf16.msra.mxu0 %v550
        %612 = vmatprep.subr.bf16.mxu0 0
        %613 = vmatpush1.bf16.msra.mxu0 0
        %614 = vmatprep.subr.bf16.mxu0 0
        %615 = vmatpush1.bf16.msra.mxu0 0
        %616 = vmatprep.subr.bf16.mxu0 0
        %617 = vmatpush1.bf16.msra.mxu0 0
        %618 = vmatprep.subr.bf16.mxu0 0
        %619 = vmatpush1.bf16.msra.mxu0 0
        %620 = vmatprep.subr.bf16.mxu0 0
        %621 = vmatpush1.bf16.msra.mxu0 0
        %622 = vmatprep.subr.bf16.mxu0 0
        %623 = vmatpush1.bf16.msra.mxu0 0
        %624 = vmatprep.subr.bf16.mxu0 0
        %625 = vmatpush1.bf16.msra.mxu0 0
        %626 = vmatprep.subr.bf16.mxu0 0
        %627 = vmatpush1.bf16.msra.mxu0 0
        %628 = vmatprep.subr.bf16.mxu0 0
        %629 = vmatpush1.bf16.msra.mxu0 0
        %630 = vmatprep.subr.bf16.mxu0 0
        %631 = vmatpush1.bf16.msra.mxu0 0
        %632 = vmatprep.subr.bf16.mxu0 0
        %633 = vmatpush1.bf16.msra.mxu0 0
        %634 = vmatprep.subr.bf16.mxu0 0
        %635 = vmatpush1.bf16.msra.mxu0 0
        %636 = vmatprep.subr.bf16.mxu0 0
        %637 = vmatpush1.bf16.msra.mxu0 0
        %638 = vmatprep.subr.bf16.mxu0 0
        %639 = vmatpush1.bf16.msra.mxu0 0
        %640 = vmatprep.mubr.bf16.mxu0 0
        %641 = vmatmul.mubr.bf16.gmra.mrb[0].mxu0 %v537
        %v642 = vpop.f32.mrb[0].mxu0
        %v643 = vadd.f32 0.0, %v642
        %v644 = vpop.f32.mrb[0].mxu0
        %v645 = vadd.f32 0.0, %v644
        %v646 = vpop.f32.mrb[0].mxu0
        %v647 = vpop.f32.mrb[0].mxu0
        %648 = vdwg.mxu0
        %649 = vmatprep.subr.bf16.mxu0 %v516
        %650 = vmatpush1.bf16.msra.mxu0 %v515
        %651 = vmatprep.subr.bf16.mxu0 %v559
        %652 = vmatpush1.bf16.msra.mxu0 %v556
        %653 = vmatprep.subr.bf16.mxu0 0
        %654 = vmatpush1.bf16.msra.mxu0 0
        %655 = vmatprep.subr.bf16.mxu0 0
        %656 = vmatpush1.bf16.msra.mxu0 0
        %657 = vmatprep.subr.bf16.mxu0 0
        %658 = vmatpush1.bf16.msra.mxu0 0
        %659 = vmatprep.subr.bf16.mxu0 0
        %660 = vmatpush1.bf16.msra.mxu0 0
        %661 = vmatprep.subr.bf16.mxu0 0
        %662 = vmatpush1.bf16.msra.mxu0 0
        %663 = vmatprep.subr.bf16.mxu0 0
        %664 = vmatpush1.bf16.msra.mxu0 0
        %665 = vmatprep.subr.bf16.mxu0 0
        %666 = vmatpush1.bf16.msra.mxu0 0
        %667 = vmatprep.subr.bf16.mxu0 0
        %668 = vmatpush1.bf16.msra.mxu0 0
        %669 = vmatprep.subr.bf16.mxu0 0
        %670 = vmatpush1.bf16.msra.mxu0 0
        %671 = vmatprep.subr.bf16.mxu0 0
        %672 = vmatpush1.bf16.msra.mxu0 0
        %673 = vmatprep.subr.bf16.mxu0 0
        %674 = vmatpush1.bf16.msra.mxu0 0
        %675 = vmatprep.subr.bf16.mxu0 0
        %676 = vmatpush1.bf16.msra.mxu0 0
        %677 = vmatprep.subr.bf16.mxu0 0
        %678 = vmatpush1.bf16.msra.mxu0 0
        %679 = vmatprep.subr.bf16.mxu0 0
        %680 = vmatpush1.bf16.msra.mxu0 0
        %681 = vmatprep.mubr.bf16.mxu0 0
        %682 = vmatmul.mubr.bf16.gmra.mrb[0].mxu0 %v537
        %v683 = vpop.f32.mrb[0].mxu0
        %v684 = vadd.f32 0.0, %v683
        %v685 = vpop.f32.mrb[0].mxu0
        %v686 = vadd.f32 0.0, %v685
        %v687 = vpop.f32.mrb[0].mxu0
        %v688 = vpop.f32.mrb[0].mxu0
        %689 = vdwg.mxu0
        %690 = vmatprep.subr.bf16.mxu0 %v518
        %691 = vmatpush1.bf16.msra.mxu0 %v517
        %692 = vmatprep.subr.bf16.mxu0 %v565
        %693 = vmatpush1.bf16.msra.mxu0 %v562
        %694 = vmatprep.subr.bf16.mxu0 0
        %695 = vmatpush1.bf16.msra.mxu0 0
        %696 = vmatprep.subr.bf16.mxu0 0
        %697 = vmatpush1.bf16.msra.mxu0 0
        %698 = vmatprep.subr.bf16.mxu0 0
        %699 = vmatpush1.bf16.msra.mxu0 0
        %700 = vmatprep.subr.bf16.mxu0 0
        %701 = vmatpush1.bf16.msra.mxu0 0
        %702 = vmatprep.subr.bf16.mxu0 0
        %703 = vmatpush1.bf16.msra.mxu0 0
        %704 = vmatprep.subr.bf16.mxu0 0
        %705 = vmatpush1.bf16.msra.mxu0 0
        %706 = vmatprep.subr.bf16.mxu0 0
        %707 = vmatpush1.bf16.msra.mxu0 0
        %708 = vmatprep.subr.bf16.mxu0 0
        %709 = vmatpush1.bf16.msra.mxu0 0
        %710 = vmatprep.subr.bf16.mxu0 0
        %711 = vmatpush1.bf16.msra.mxu0 0
        %712 = vmatprep.subr.bf16.mxu0 0
        %713 = vmatpush1.bf16.msra.mxu0 0
        %714 = vmatprep.subr.bf16.mxu0 0
        %715 = vmatpush1.bf16.msra.mxu0 0
        %716 = vmatprep.subr.bf16.mxu0 0
        %717 = vmatpush1.bf16.msra.mxu0 0
        %718 = vmatprep.subr.bf16.mxu0 0
        %719 = vmatpush1.bf16.msra.mxu0 0
        %720 = vmatprep.subr.bf16.mxu0 0
        %721 = vmatpush1.bf16.msra.mxu0 0
        %722 = vmatprep.mubr.bf16.mxu0 0
        %723 = vmatmul.mubr.bf16.gmra.mrb[0].mxu0 %v537
        %v724 = vpop.f32.mrb[0].mxu0
        %v725 = vadd.f32 0.0, %v724
        %v726 = vpop.f32.mrb[0].mxu0
        %v727 = vadd.f32 0.0, %v726
        %v728 = vpop.f32.mrb[0].mxu0
        %v729 = vpop.f32.mrb[0].mxu0
        %730 = vdwg.mxu0
        %s731 = scalar_lea.vmem %s422, 128 [#allocation2]
        %v732 = vld [vmem:[%s731] sm:$0xff]
        %v733 = vld [vmem:[%s731 + $0x8] sm:$0xff]
        %v734 = vld [vmem:[%s731 + $0x10] sm:$0xff]
        %v735 = vld [vmem:[%s731 + $0x18] sm:$0xff]
        %v736 = vld [vmem:[%s731 + $0x20] sm:$0xff]
        %v737 = vld [vmem:[%s731 + $0x28] sm:$0xff]
        %v738 = vld [vmem:[%s731 + $0x30] sm:$0xff]
        %v739 = vld [vmem:[%s731 + $0x38] sm:$0xff]
        %v740 = vld [vmem:[%s731 + $0x40] sm:$0xff]
        %v741 = vld [vmem:[%s731 + $0x48] sm:$0xff]
        %v742 = vld [vmem:[%s731 + $0x50] sm:$0xff]
        %v743 = vld [vmem:[%s731 + $0x58] sm:$0xff]
        %v744 = vld [vmem:[%s731 + $0x60] sm:$0x33]
        %v745 = vld [vmem:[%s731 + $0x68] sm:$0x33]
        %v746 = vld [vmem:[%s731 + $0x70] sm:$0x33]
        %v747 = vld [vmem:[%s731 + $0x78] sm:$0x33]
        %v764 = vunpack.c.l.b16 %v732
        %v765 = vunpack.c.h.b16 %v732
        %v766 = vunpack.c.l.b16 %v733
        %v767 = vunpack.c.h.b16 %v733
        %v768 = vunpack.c.l.b16 %v734
        %v769 = vunpack.c.h.b16 %v734
        %v770 = vunpack.c.l.b16 %v735
        %v771 = vunpack.c.h.b16 %v735
        %v772 = vunpack.c.l.b16 %v736
        %v773 = vunpack.c.h.b16 %v736
        %v774 = vunpack.c.l.b16 %v737
        %v775 = vunpack.c.h.b16 %v737
        %v776 = vunpack.c.l.b16 %v738
        %v777 = vunpack.c.h.b16 %v738
        %v778 = vunpack.c.l.b16 %v739
        %v779 = vunpack.c.h.b16 %v739
        %v780 = vunpack.c.l.b16 %v740
        %v781 = vunpack.c.h.b16 %v740
        %v782 = vunpack.c.l.b16 %v741
        %v783 = vunpack.c.h.b16 %v741
        %v784 = vunpack.c.l.b16 %v742
        %v785 = vunpack.c.h.b16 %v742
        %v786 = vunpack.c.l.b16 %v743
        %v787 = vunpack.c.h.b16 %v743
        %v788 = vunpack.c.l.b16 %v744
        %v789 = vunpack.c.h.b16 %v744
        %v790 = vunpack.c.l.b16 %v745
        %v791 = vunpack.c.h.b16 %v745
        %v792 = vunpack.c.l.b16 %v746
        %v793 = vunpack.c.h.b16 %v746
        %v794 = vunpack.c.l.b16 %v747
        %v795 = vunpack.c.h.b16 %v747
        %v796 = vpack.c.b16 %v772, %v764
        %v797 = vpack.c.b16 %v773, %v765
        %v798 = vpack.c.b16 %v774, %v766
        %v799 = vpack.c.b16 %v775, %v767
        %v800 = vpack.c.b16 %v776, %v768
        %v801 = vpack.c.b16 %v777, %v769
        %v802 = vpack.c.b16 %v778, %v770
        %v803 = vpack.c.b16 %v779, %v771
        %v804 = vpack.c.b16 %v788, %v780
        %v805 = vpack.c.b16 %v789, %v781
        %v806 = vpack.c.b16 %v790, %v782
        %v807 = vpack.c.b16 %v791, %v783
        %v808 = vpack.c.b16 %v792, %v784
        %v809 = vpack.c.b16 %v793, %v785
        %v810 = vpack.c.b16 %v794, %v786
        %v811 = vpack.c.b16 %v795, %v787
        %v821 = vand.u32 %v804, %v542
        %v824 = vand.u32 %v805, %v542
        %v827 = vand.u32 %v806, %v542
        %v830 = vand.u32 %v807, %v542
        %v833 = vand.u32 %v808, %v542
        %v836 = vand.u32 %v809, %v542
        %v839 = vand.u32 %v810, %v542
        %v842 = vand.u32 %v811, %v542
        %844 = vmatprep.subr.bf16.mxu0 %v797
        %845 = vmatpush1.bf16.msra.mxu0 %v796
        %846 = vmatprep.subr.bf16.mxu0 %v824
        %847 = vmatpush1.bf16.msra.mxu0 %v821
        %848 = vmatprep.subr.bf16.mxu0 0
        %849 = vmatpush1.bf16.msra.mxu0 0
        %850 = vmatprep.subr.bf16.mxu0 0
        %851 = vmatpush1.bf16.msra.mxu0 0
        %852 = vmatprep.subr.bf16.mxu0 0
        %853 = vmatpush1.bf16.msra.mxu0 0
        %854 = vmatprep.subr.bf16.mxu0 0
        %855 = vmatpush1.bf16.msra.mxu0 0
        %856 = vmatprep.subr.bf16.mxu0 0
        %857 = vmatpush1.bf16.msra.mxu0 0
        %858 = vmatprep.subr.bf16.mxu0 0
        %859 = vmatpush1.bf16.msra.mxu0 0
        %860 = vmatprep.subr.bf16.mxu0 0
        %861 = vmatpush1.bf16.msra.mxu0 0
        %862 = vmatprep.subr.bf16.mxu0 0
        %863 = vmatpush1.bf16.msra.mxu0 0
        %864 = vmatprep.subr.bf16.mxu0 0
        %865 = vmatpush1.bf16.msra.mxu0 0
        %866 = vmatprep.subr.bf16.mxu0 0
        %867 = vmatpush1.bf16.msra.mxu0 0
        %868 = vmatprep.subr.bf16.mxu0 0
        %869 = vmatpush1.bf16.msra.mxu0 0
        %870 = vmatprep.subr.bf16.mxu0 0
        %871 = vmatpush1.bf16.msra.mxu0 0
        %872 = vmatprep.subr.bf16.mxu0 0
        %873 = vmatpush1.bf16.msra.mxu0 0
        %874 = vmatprep.subr.bf16.mxu0 0
        %875 = vmatpush1.bf16.msra.mxu0 0
        %876 = vmatprep.mubr.bf16.mxu0 0
        %877 = vmatmul.mubr.bf16.gmra.mrb[0].mxu0 %v537
        %v878 = vpop.f32.mrb[0].mxu0
        %v879 = vadd.f32 0.0, %v878
        %v880 = vpop.f32.mrb[0].mxu0
        %v881 = vadd.f32 0.0, %v880
        %v882 = vpop.f32.mrb[0].mxu0
        %v883 = vpop.f32.mrb[0].mxu0
        %884 = vdwg.mxu0
        %885 = vmatprep.subr.bf16.mxu0 %v799
        %886 = vmatpush1.bf16.msra.mxu0 %v798
        %887 = vmatprep.subr.bf16.mxu0 %v830
        %888 = vmatpush1.bf16.msra.mxu0 %v827
        %889 = vmatprep.subr.bf16.mxu0 0
        %890 = vmatpush1.bf16.msra.mxu0 0
        %891 = vmatprep.subr.bf16.mxu0 0
        %892 = vmatpush1.bf16.msra.mxu0 0
        %893 = vmatprep.subr.bf16.mxu0 0
        %894 = vmatpush1.bf16.msra.mxu0 0
        %895 = vmatprep.subr.bf16.mxu0 0
        %896 = vmatpush1.bf16.msra.mxu0 0
        %897 = vmatprep.subr.bf16.mxu0 0
        %898 = vmatpush1.bf16.msra.mxu0 0
        %899 = vmatprep.subr.bf16.mxu0 0
        %900 = vmatpush1.bf16.msra.mxu0 0
        %901 = vmatprep.subr.bf16.mxu0 0
        %902 = vmatpush1.bf16.msra.mxu0 0
        %903 = vmatprep.subr.bf16.mxu0 0
        %904 = vmatpush1.bf16.msra.mxu0 0
        %905 = vmatprep.subr.bf16.mxu0 0
        %906 = vmatpush1.bf16.msra.mxu0 0
        %907 = vmatprep.subr.bf16.mxu0 0
        %908 = vmatpush1.bf16.msra.mxu0 0
        %909 = vmatprep.subr.bf16.mxu0 0
        %910 = vmatpush1.bf16.msra.mxu0 0
        %911 = vmatprep.subr.bf16.mxu0 0
        %912 = vmatpush1.bf16.msra.mxu0 0
        %913 = vmatprep.subr.bf16.mxu0 0
        %914 = vmatpush1.bf16.msra.mxu0 0
        %915 = vmatprep.subr.bf16.mxu0 0
        %916 = vmatpush1.bf16.msra.mxu0 0
        %917 = vmatprep.mubr.bf16.mxu0 0
        %918 = vmatmul.mubr.bf16.gmra.mrb[0].mxu0 %v537
        %v919 = vpop.f32.mrb[0].mxu0
        %v920 = vadd.f32 0.0, %v919
        %v921 = vpop.f32.mrb[0].mxu0
        %v922 = vadd.f32 0.0, %v921
        %v923 = vpop.f32.mrb[0].mxu0
        %v924 = vpop.f32.mrb[0].mxu0
        %925 = vdwg.mxu0
        %926 = vmatprep.subr.bf16.mxu0 %v801
        %927 = vmatpush1.bf16.msra.mxu0 %v800
        %928 = vmatprep.subr.bf16.mxu0 %v836
        %929 = vmatpush1.bf16.msra.mxu0 %v833
        %930 = vmatprep.subr.bf16.mxu0 0
        %931 = vmatpush1.bf16.msra.mxu0 0
        %932 = vmatprep.subr.bf16.mxu0 0
        %933 = vmatpush1.bf16.msra.mxu0 0
        %934 = vmatprep.subr.bf16.mxu0 0
        %935 = vmatpush1.bf16.msra.mxu0 0
        %936 = vmatprep.subr.bf16.mxu0 0
        %937 = vmatpush1.bf16.msra.mxu0 0
        %938 = vmatprep.subr.bf16.mxu0 0
        %939 = vmatpush1.bf16.msra.mxu0 0
        %940 = vmatprep.subr.bf16.mxu0 0
        %941 = vmatpush1.bf16.msra.mxu0 0
        %942 = vmatprep.subr.bf16.mxu0 0
        %943 = vmatpush1.bf16.msra.mxu0 0
        %944 = vmatprep.subr.bf16.mxu0 0
        %945 = vmatpush1.bf16.msra.mxu0 0
        %946 = vmatprep.subr.bf16.mxu0 0
        %947 = vmatpush1.bf16.msra.mxu0 0
        %948 = vmatprep.subr.bf16.mxu0 0
        %949 = vmatpush1.bf16.msra.mxu0 0
        %950 = vmatprep.subr.bf16.mxu0 0
        %951 = vmatpush1.bf16.msra.mxu0 0
        %952 = vmatprep.subr.bf16.mxu0 0
        %953 = vmatpush1.bf16.msra.mxu0 0
        %954 = vmatprep.subr.bf16.mxu0 0
        %955 = vmatpush1.bf16.msra.mxu0 0
        %956 = vmatprep.subr.bf16.mxu0 0
        %957 = vmatpush1.bf16.msra.mxu0 0
        %958 = vmatprep.mubr.bf16.mxu0 0
        %959 = vmatmul.mubr.bf16.gmra.mrb[0].mxu0 %v537
        %v960 = vpop.f32.mrb[0].mxu0
        %v961 = vadd.f32 0.0, %v960
        %v962 = vpop.f32.mrb[0].mxu0
        %v963 = vadd.f32 0.0, %v962
        %v964 = vpop.f32.mrb[0].mxu0
        %v965 = vpop.f32.mrb[0].mxu0
        %966 = vdwg.mxu0
        %967 = vmatprep.subr.bf16.mxu0 %v803
        %968 = vmatpush1.bf16.msra.mxu0 %v802
        %969 = vmatprep.subr.bf16.mxu0 %v842
        %970 = vmatpush1.bf16.msra.mxu0 %v839
        %971 = vmatprep.subr.bf16.mxu0 0
        %972 = vmatpush1.bf16.msra.mxu0 0
        %973 = vmatprep.subr.bf16.mxu0 0
        %974 = vmatpush1.bf16.msra.mxu0 0
        %975 = vmatprep.subr.bf16.mxu0 0
        %976 = vmatpush1.bf16.msra.mxu0 0
        %977 = vmatprep.subr.bf16.mxu0 0
        %978 = vmatpush1.bf16.msra.mxu0 0
        %979 = vmatprep.subr.bf16.mxu0 0
        %980 = vmatpush1.bf16.msra.mxu0 0
        %981 = vmatprep.subr.bf16.mxu0 0
        %982 = vmatpush1.bf16.msra.mxu0 0
        %983 = vmatprep.subr.bf16.mxu0 0
        %984 = vmatpush1.bf16.msra.mxu0 0
        %985 = vmatprep.subr.bf16.mxu0 0
        %986 = vmatpush1.bf16.msra.mxu0 0
        %987 = vmatprep.subr.bf16.mxu0 0
        %988 = vmatpush1.bf16.msra.mxu0 0
        %989 = vmatprep.subr.bf16.mxu0 0
        %990 = vmatpush1.bf16.msra.mxu0 0
        %991 = vmatprep.subr.bf16.mxu0 0
        %992 = vmatpush1.bf16.msra.mxu0 0
        %993 = vmatprep.subr.bf16.mxu0 0
        %994 = vmatpush1.bf16.msra.mxu0 0
        %995 = vmatprep.subr.bf16.mxu0 0
        %996 = vmatpush1.bf16.msra.mxu0 0
        %997 = vmatprep.subr.bf16.mxu0 0
        %998 = vmatpush1.bf16.msra.mxu0 0
        %999 = vmatprep.mubr.bf16.mxu0 0
        %1000 = vmatmul.mubr.bf16.gmra.mrb[0].mxu0 %v537
        %v1001 = vpop.f32.mrb[0].mxu0
        %v1002 = vadd.f32 0.0, %v1001
        %v1003 = vpop.f32.mrb[0].mxu0
        %v1004 = vadd.f32 0.0, %v1003
        %v1005 = vpop.f32.mrb[0].mxu0
        %v1006 = vpop.f32.mrb[0].mxu0
        %1007 = vdwg.mxu0
        %v1008 = vmax.f32 %v602, %v879
        %v1009 = vmax.f32 %v604, %v881
        %v1010 = vmax.f32 %v643, %v920
        %v1011 = vmax.f32 %v645, %v922
        %v1012 = vmax.f32 %v684, %v961
        %v1013 = vmax.f32 %v686, %v963
        %v1014 = vmax.f32 %v725, %v1002
        %v1015 = vmax.f32 %v727, %v1004
        %s1016 = scalar_lea.vmem %s422, 256 [#allocation2]
        %v1017 = vld [vmem:[%s1016] sm:$0xff]
        %v1018 = vld [vmem:[%s1016 + $0x8] sm:$0xff]
        %v1019 = vld [vmem:[%s1016 + $0x10] sm:$0xff]
        %v1020 = vld [vmem:[%s1016 + $0x18] sm:$0xff]
        %v1021 = vld [vmem:[%s1016 + $0x20] sm:$0xff]
        %v1022 = vld [vmem:[%s1016 + $0x28] sm:$0xff]
        %v1023 = vld [vmem:[%s1016 + $0x30] sm:$0xff]
        %v1024 = vld [vmem:[%s1016 + $0x38] sm:$0xff]
        %v1025 = vld [vmem:[%s1016 + $0x40] sm:$0xff]
        %v1026 = vld [vmem:[%s1016 + $0x48] sm:$0xff]
        %v1027 = vld [vmem:[%s1016 + $0x50] sm:$0xff]
        %v1028 = vld [vmem:[%s1016 + $0x58] sm:$0xff]
        %v1029 = vld [vmem:[%s1016 + $0x60] sm:$0x33]
        %v1030 = vld [vmem:[%s1016 + $0x68] sm:$0x33]
        %v1031 = vld [vmem:[%s1016 + $0x70] sm:$0x33]
        %v1032 = vld [vmem:[%s1016 + $0x78] sm:$0x33]
        %v1049 = vunpack.c.l.b16 %v1017
        %v1050 = vunpack.c.h.b16 %v1017
        %v1051 = vunpack.c.l.b16 %v1018
        %v1052 = vunpack.c.h.b16 %v1018
        %v1053 = vunpack.c.l.b16 %v1019
        %v1054 = vunpack.c.h.b16 %v1019
        %v1055 = vunpack.c.l.b16 %v1020
        %v1056 = vunpack.c.h.b16 %v1020
        %v1057 = vunpack.c.l.b16 %v1021
        %v1058 = vunpack.c.h.b16 %v1021
        %v1059 = vunpack.c.l.b16 %v1022
        %v1060 = vunpack.c.h.b16 %v1022
        %v1061 = vunpack.c.l.b16 %v1023
        %v1062 = vunpack.c.h.b16 %v1023
        %v1063 = vunpack.c.l.b16 %v1024
        %v1064 = vunpack.c.h.b16 %v1024
        %v1065 = vunpack.c.l.b16 %v1025
        %v1066 = vunpack.c.h.b16 %v1025
        %v1067 = vunpack.c.l.b16 %v1026
        %v1068 = vunpack.c.h.b16 %v1026
        %v1069 = vunpack.c.l.b16 %v1027
        %v1070 = vunpack.c.h.b16 %v1027
        %v1071 = vunpack.c.l.b16 %v1028
        %v1072 = vunpack.c.h.b16 %v1028
        %v1073 = vunpack.c.l.b16 %v1029
        %v1074 = vunpack.c.h.b16 %v1029
        %v1075 = vunpack.c.l.b16 %v1030
        %v1076 = vunpack.c.h.b16 %v1030
        %v1077 = vunpack.c.l.b16 %v1031
        %v1078 = vunpack.c.h.b16 %v1031
        %v1079 = vunpack.c.l.b16 %v1032
        %v1080 = vunpack.c.h.b16 %v1032
        %v1081 = vpack.c.b16 %v1057, %v1049
        %v1082 = vpack.c.b16 %v1058, %v1050
        %v1083 = vpack.c.b16 %v1059, %v1051
        %v1084 = vpack.c.b16 %v1060, %v1052
        %v1085 = vpack.c.b16 %v1061, %v1053
        %v1086 = vpack.c.b16 %v1062, %v1054
        %v1087 = vpack.c.b16 %v1063, %v1055
        %v1088 = vpack.c.b16 %v1064, %v1056
        %v1089 = vpack.c.b16 %v1073, %v1065
        %v1090 = vpack.c.b16 %v1074, %v1066
        %v1091 = vpack.c.b16 %v1075, %v1067
        %v1092 = vpack.c.b16 %v1076, %v1068
        %v1093 = vpack.c.b16 %v1077, %v1069
        %v1094 = vpack.c.b16 %v1078, %v1070
        %v1095 = vpack.c.b16 %v1079, %v1071
        %v1096 = vpack.c.b16 %v1080, %v1072
        %v1106 = vand.u32 %v1089, %v542
        %v1109 = vand.u32 %v1090, %v542
        %v1112 = vand.u32 %v1091, %v542
        %v1115 = vand.u32 %v1092, %v542
        %v1118 = vand.u32 %v1093, %v542
        %v1121 = vand.u32 %v1094, %v542
        %v1124 = vand.u32 %v1095, %v542
        %v1127 = vand.u32 %v1096, %v542
        %1129 = vmatprep.subr.bf16.mxu0 %v1082
        %1130 = vmatpush1.bf16.msra.mxu0 %v1081
        %1131 = vmatprep.subr.bf16.mxu0 %v1109
        %1132 = vmatpush1.bf16.msra.mxu0 %v1106
        %1133 = vmatprep.subr.bf16.mxu0 0
        %1134 = vmatpush1.bf16.msra.mxu0 0
        %1135 = vmatprep.subr.bf16.mxu0 0
        %1136 = vmatpush1.bf16.msra.mxu0 0
        %1137 = vmatprep.subr.bf16.mxu0 0
        %1138 = vmatpush1.bf16.msra.mxu0 0
        %1139 = vmatprep.subr.bf16.mxu0 0
        %1140 = vmatpush1.bf16.msra.mxu0 0
        %1141 = vmatprep.subr.bf16.mxu0 0
        %1142 = vmatpush1.bf16.msra.mxu0 0
        %1143 = vmatprep.subr.bf16.mxu0 0
        %1144 = vmatpush1.bf16.msra.mxu0 0
        %1145 = vmatprep.subr.bf16.mxu0 0
        %1146 = vmatpush1.bf16.msra.mxu0 0
        %1147 = vmatprep.subr.bf16.mxu0 0
        %1148 = vmatpush1.bf16.msra.mxu0 0
        %1149 = vmatprep.subr.bf16.mxu0 0
        %1150 = vmatpush1.bf16.msra.mxu0 0
        %1151 = vmatprep.subr.bf16.mxu0 0
        %1152 = vmatpush1.bf16.msra.mxu0 0
        %1153 = vmatprep.subr.bf16.mxu0 0
        %1154 = vmatpush1.bf16.msra.mxu0 0
        %1155 = vmatprep.subr.bf16.mxu0 0
        %1156 = vmatpush1.bf16.msra.mxu0 0
        %1157 = vmatprep.subr.bf16.mxu0 0
        %1158 = vmatpush1.bf16.msra.mxu0 0
        %1159 = vmatprep.subr.bf16.mxu0 0
        %1160 = vmatpush1.bf16.msra.mxu0 0
        %1161 = vmatprep.mubr.bf16.mxu0 0
        %1162 = vmatmul.mubr.bf16.gmra.mrb[0].mxu0 %v537
        %v1163 = vpop.f32.mrb[0].mxu0
        %v1164 = vadd.f32 0.0, %v1163
        %v1165 = vpop.f32.mrb[0].mxu0
        %v1166 = vadd.f32 0.0, %v1165
        %v1167 = vpop.f32.mrb[0].mxu0
        %v1168 = vpop.f32.mrb[0].mxu0
        %1169 = vdwg.mxu0
        %1170 = vmatprep.subr.bf16.mxu0 %v1084
        %1171 = vmatpush1.bf16.msra.mxu0 %v1083
        %1172 = vmatprep.subr.bf16.mxu0 %v1115
        %1173 = vmatpush1.bf16.msra.mxu0 %v1112
        %1174 = vmatprep.subr.bf16.mxu0 0
        %1175 = vmatpush1.bf16.msra.mxu0 0
        %1176 = vmatprep.subr.bf16.mxu0 0
        %1177 = vmatpush1.bf16.msra.mxu0 0
        %1178 = vmatprep.subr.bf16.mxu0 0
        %1179 = vmatpush1.bf16.msra.mxu0 0
        %1180 = vmatprep.subr.bf16.mxu0 0
        %1181 = vmatpush1.bf16.msra.mxu0 0
        %1182 = vmatprep.subr.bf16.mxu0 0
        %1183 = vmatpush1.bf16.msra.mxu0 0
        %1184 = vmatprep.subr.bf16.mxu0 0
        %1185 = vmatpush1.bf16.msra.mxu0 0
        %1186 = vmatprep.subr.bf16.mxu0 0
        %1187 = vmatpush1.bf16.msra.mxu0 0
        %1188 = vmatprep.subr.bf16.mxu0 0
        %1189 = vmatpush1.bf16.msra.mxu0 0
        %1190 = vmatprep.subr.bf16.mxu0 0
        %1191 = vmatpush1.bf16.msra.mxu0 0
        %1192 = vmatprep.subr.bf16.mxu0 0
        %1193 = vmatpush1.bf16.msra.mxu0 0
        %1194 = vmatprep.subr.bf16.mxu0 0
        %1195 = vmatpush1.bf16.msra.mxu0 0
        %1196 = vmatprep.subr.bf16.mxu0 0
        %1197 = vmatpush1.bf16.msra.mxu0 0
        %1198 = vmatprep.subr.bf16.mxu0 0
        %1199 = vmatpush1.bf16.msra.mxu0 0
        %1200 = vmatprep.subr.bf16.mxu0 0
        %1201 = vmatpush1.bf16.msra.mxu0 0
        %1202 = vmatprep.mubr.bf16.mxu0 0
        %1203 = vmatmul.mubr.bf16.gmra.mrb[0].mxu0 %v537
        %v1204 = vpop.f32.mrb[0].mxu0
        %v1205 = vadd.f32 0.0, %v1204
        %v1206 = vpop.f32.mrb[0].mxu0
        %v1207 = vadd.f32 0.0, %v1206
        %v1208 = vpop.f32.mrb[0].mxu0
        %v1209 = vpop.f32.mrb[0].mxu0
        %1210 = vdwg.mxu0
        %1211 = vmatprep.subr.bf16.mxu0 %v1086
        %1212 = vmatpush1.bf16.msra.mxu0 %v1085
        %1213 = vmatprep.subr.bf16.mxu0 %v1121
        %1214 = vmatpush1.bf16.msra.mxu0 %v1118
        %1215 = vmatprep.subr.bf16.mxu0 0
        %1216 = vmatpush1.bf16.msra.mxu0 0
        %1217 = vmatprep.subr.bf16.mxu0 0
        %1218 = vmatpush1.bf16.msra.mxu0 0
        %1219 = vmatprep.subr.bf16.mxu0 0
        %1220 = vmatpush1.bf16.msra.mxu0 0
        %1221 = vmatprep.subr.bf16.mxu0 0
        %1222 = vmatpush1.bf16.msra.mxu0 0
        %1223 = vmatprep.subr.bf16.mxu0 0
        %1224 = vmatpush1.bf16.msra.mxu0 0
        %1225 = vmatprep.subr.bf16.mxu0 0
        %1226 = vmatpush1.bf16.msra.mxu0 0
        %1227 = vmatprep.subr.bf16.mxu0 0
        %1228 = vmatpush1.bf16.msra.mxu0 0
        %1229 = vmatprep.subr.bf16.mxu0 0
        %1230 = vmatpush1.bf16.msra.mxu0 0
        %1231 = vmatprep.subr.bf16.mxu0 0
        %1232 = vmatpush1.bf16.msra.mxu0 0
        %1233 = vmatprep.subr.bf16.mxu0 0
        %1234 = vmatpush1.bf16.msra.mxu0 0
        %1235 = vmatprep.subr.bf16.mxu0 0
        %1236 = vmatpush1.bf16.msra.mxu0 0
        %1237 = vmatprep.subr.bf16.mxu0 0
        %1238 = vmatpush1.bf16.msra.mxu0 0
        %1239 = vmatprep.subr.bf16.mxu0 0
        %1240 = vmatpush1.bf16.msra.mxu0 0
        %1241 = vmatprep.subr.bf16.mxu0 0
        %1242 = vmatpush1.bf16.msra.mxu0 0
        %1243 = vmatprep.mubr.bf16.mxu0 0
        %1244 = vmatmul.mubr.bf16.gmra.mrb[0].mxu0 %v537
        %v1245 = vpop.f32.mrb[0].mxu0
        %v1246 = vadd.f32 0.0, %v1245
        %v1247 = vpop.f32.mrb[0].mxu0
        %v1248 = vadd.f32 0.0, %v1247
        %v1249 = vpop.f32.mrb[0].mxu0
        %v1250 = vpop.f32.mrb[0].mxu0
        %1251 = vdwg.mxu0
        %1252 = vmatprep.subr.bf16.mxu0 %v1088
        %1253 = vmatpush1.bf16.msra.mxu0 %v1087
        %1254 = vmatprep.subr.bf16.mxu0 %v1127
        %1255 = vmatpush1.bf16.msra.mxu0 %v1124
        %1256 = vmatprep.subr.bf16.mxu0 0
        %1257 = vmatpush1.bf16.msra.mxu0 0
        %1258 = vmatprep.subr.bf16.mxu0 0
        %1259 = vmatpush1.bf16.msra.mxu0 0
        %1260 = vmatprep.subr.bf16.mxu0 0
        %1261 = vmatpush1.bf16.msra.mxu0 0
        %1262 = vmatprep.subr.bf16.mxu0 0
        %1263 = vmatpush1.bf16.msra.mxu0 0
        %1264 = vmatprep.subr.bf16.mxu0 0
        %1265 = vmatpush1.bf16.msra.mxu0 0
        %1266 = vmatprep.subr.bf16.mxu0 0
        %1267 = vmatpush1.bf16.msra.mxu0 0
        %1268 = vmatprep.subr.bf16.mxu0 0
        %1269 = vmatpush1.bf16.msra.mxu0 0
        %1270 = vmatprep.subr.bf16.mxu0 0
        %1271 = vmatpush1.bf16.msra.mxu0 0
        %1272 = vmatprep.subr.bf16.mxu0 0
        %1273 = vmatpush1.bf16.msra.mxu0 0
        %1274 = vmatprep.subr.bf16.mxu0 0
        %1275 = vmatpush1.bf16.msra.mxu0 0
        %1276 = vmatprep.subr.bf16.mxu0 0
        %1277 = vmatpush1.bf16.msra.mxu0 0
        %1278 = vmatprep.subr.bf16.mxu0 0
        %1279 = vmatpush1.bf16.msra.mxu0 0
        %1280 = vmatprep.subr.bf16.mxu0 0
        %1281 = vmatpush1.bf16.msra.mxu0 0
        %1282 = vmatprep.subr.bf16.mxu0 0
        %1283 = vmatpush1.bf16.msra.mxu0 0
        %1284 = vmatprep.mubr.bf16.mxu0 0
        %1285 = vmatmul.mubr.bf16.gmra.mrb[0].mxu0 %v537
        %v1286 = vpop.f32.mrb[0].mxu0
        %v1287 = vadd.f32 0.0, %v1286
        %v1288 = vpop.f32.mrb[0].mxu0
        %v1289 = vadd.f32 0.0, %v1288
        %v1290 = vpop.f32.mrb[0].mxu0
        %v1291 = vpop.f32.mrb[0].mxu0
        %1292 = vdwg.mxu0
        %v1293 = vmax.f32 %v1008, %v1164
        %v1294 = vmax.f32 %v1009, %v1166
        %v1295 = vmax.f32 %v1010, %v1205
        %v1296 = vmax.f32 %v1011, %v1207
        %v1297 = vmax.f32 %v1012, %v1246
        %v1298 = vmax.f32 %v1013, %v1248
        %v1299 = vmax.f32 %v1014, %v1287
        %v1300 = vmax.f32 %v1015, %v1289
        %s1301 = scalar_lea.vmem %s422, 384 [#allocation2]
        %v1302 = vld [vmem:[%s1301] sm:$0xff]
        %v1303 = vld [vmem:[%s1301 + $0x8] sm:$0xff]
        %v1304 = vld [vmem:[%s1301 + $0x10] sm:$0xff]
        %v1305 = vld [vmem:[%s1301 + $0x18] sm:$0xff]
        %v1306 = vld [vmem:[%s1301 + $0x20] sm:$0xff]
        %v1307 = vld [vmem:[%s1301 + $0x28] sm:$0xff]
        %v1308 = vld [vmem:[%s1301 + $0x30] sm:$0xff]
        %v1309 = vld [vmem:[%s1301 + $0x38] sm:$0xff]
        %v1310 = vld [vmem:[%s1301 + $0x40] sm:$0xff]
        %v1311 = vld [vmem:[%s1301 + $0x48] sm:$0xff]
        %v1312 = vld [vmem:[%s1301 + $0x50] sm:$0xff]
        %v1313 = vld [vmem:[%s1301 + $0x58] sm:$0xff]
        %v1314 = vld [vmem:[%s1301 + $0x60] sm:$0x33]
        %v1315 = vld [vmem:[%s1301 + $0x68] sm:$0x33]
        %v1316 = vld [vmem:[%s1301 + $0x70] sm:$0x33]
        %v1317 = vld [vmem:[%s1301 + $0x78] sm:$0x33]
        %v1334 = vunpack.c.l.b16 %v1302
        %v1335 = vunpack.c.h.b16 %v1302
        %v1336 = vunpack.c.l.b16 %v1303
        %v1337 = vunpack.c.h.b16 %v1303
        %v1338 = vunpack.c.l.b16 %v1304
        %v1339 = vunpack.c.h.b16 %v1304
        %v1340 = vunpack.c.l.b16 %v1305
        %v1341 = vunpack.c.h.b16 %v1305
        %v1342 = vunpack.c.l.b16 %v1306
        %v1343 = vunpack.c.h.b16 %v1306
        %v1344 = vunpack.c.l.b16 %v1307
        %v1345 = vunpack.c.h.b16 %v1307
        %v1346 = vunpack.c.l.b16 %v1308
        %v1347 = vunpack.c.h.b16 %v1308
        %v1348 = vunpack.c.l.b16 %v1309
        %v1349 = vunpack.c.h.b16 %v1309
        %v1350 = vunpack.c.l.b16 %v1310
        %v1351 = vunpack.c.h.b16 %v1310
        %v1352 = vunpack.c.l.b16 %v1311
        %v1353 = vunpack.c.h.b16 %v1311
        %v1354 = vunpack.c.l.b16 %v1312
        %v1355 = vunpack.c.h.b16 %v1312
        %v1356 = vunpack.c.l.b16 %v1313
        %v1357 = vunpack.c.h.b16 %v1313
        %v1358 = vunpack.c.l.b16 %v1314
        %v1359 = vunpack.c.h.b16 %v1314
        %v1360 = vunpack.c.l.b16 %v1315
        %v1361 = vunpack.c.h.b16 %v1315
        %v1362 = vunpack.c.l.b16 %v1316
        %v1363 = vunpack.c.h.b16 %v1316
        %v1364 = vunpack.c.l.b16 %v1317
        %v1365 = vunpack.c.h.b16 %v1317
        %v1366 = vpack.c.b16 %v1342, %v1334
        %v1367 = vpack.c.b16 %v1343, %v1335
        %v1368 = vpack.c.b16 %v1344, %v1336
        %v1369 = vpack.c.b16 %v1345, %v1337
        %v1370 = vpack.c.b16 %v1346, %v1338
        %v1371 = vpack.c.b16 %v1347, %v1339
        %v1372 = vpack.c.b16 %v1348, %v1340
        %v1373 = vpack.c.b16 %v1349, %v1341
        %v1374 = vpack.c.b16 %v1358, %v1350
        %v1375 = vpack.c.b16 %v1359, %v1351
        %v1376 = vpack.c.b16 %v1360, %v1352
        %v1377 = vpack.c.b16 %v1361, %v1353
        %v1378 = vpack.c.b16 %v1362, %v1354
        %v1379 = vpack.c.b16 %v1363, %v1355
        %v1380 = vpack.c.b16 %v1364, %v1356
        %v1381 = vpack.c.b16 %v1365, %v1357
        %v1391 = vand.u32 %v1374, %v542
        %v1394 = vand.u32 %v1375, %v542
        %v1397 = vand.u32 %v1376, %v542
        %v1400 = vand.u32 %v1377, %v542
        %v1403 = vand.u32 %v1378, %v542
        %v1406 = vand.u32 %v1379, %v542
        %v1409 = vand.u32 %v1380, %v542
        %v1412 = vand.u32 %v1381, %v542
        %1414 = vmatprep.subr.bf16.mxu0 %v1367
        %1415 = vmatpush1.bf16.msra.mxu0 %v1366
        %1416 = vmatprep.subr.bf16.mxu0 %v1394
        %1417 = vmatpush1.bf16.msra.mxu0 %v1391
        %1418 = vmatprep.subr.bf16.mxu0 0
        %1419 = vmatpush1.bf16.msra.mxu0 0
        %1420 = vmatprep.subr.bf16.mxu0 0
        %1421 = vmatpush1.bf16.msra.mxu0 0
        %1422 = vmatprep.subr.bf16.mxu0 0
        %1423 = vmatpush1.bf16.msra.mxu0 0
        %1424 = vmatprep.subr.bf16.mxu0 0
        %1425 = vmatpush1.bf16.msra.mxu0 0
        %1426 = vmatprep.subr.bf16.mxu0 0
        %1427 = vmatpush1.bf16.msra.mxu0 0
        %1428 = vmatprep.subr.bf16.mxu0 0
        %1429 = vmatpush1.bf16.msra.mxu0 0
        %1430 = vmatprep.subr.bf16.mxu0 0
        %1431 = vmatpush1.bf16.msra.mxu0 0
        %1432 = vmatprep.subr.bf16.mxu0 0
        %1433 = vmatpush1.bf16.msra.mxu0 0
        %1434 = vmatprep.subr.bf16.mxu0 0
        %1435 = vmatpush1.bf16.msra.mxu0 0
        %1436 = vmatprep.subr.bf16.mxu0 0
        %1437 = vmatpush1.bf16.msra.mxu0 0
        %1438 = vmatprep.subr.bf16.mxu0 0
        %1439 = vmatpush1.bf16.msra.mxu0 0
        %1440 = vmatprep.subr.bf16.mxu0 0
        %1441 = vmatpush1.bf16.msra.mxu0 0
        %1442 = vmatprep.subr.bf16.mxu0 0
        %1443 = vmatpush1.bf16.msra.mxu0 0
        %1444 = vmatprep.subr.bf16.mxu0 0
        %1445 = vmatpush1.bf16.msra.mxu0 0
        %1446 = vmatprep.mubr.bf16.mxu0 0
        %1447 = vmatmul.mubr.bf16.gmra.mrb[0].mxu0 %v537
        %v1448 = vpop.f32.mrb[0].mxu0
        %v1449 = vadd.f32 0.0, %v1448
        %v1450 = vpop.f32.mrb[0].mxu0
        %v1451 = vadd.f32 0.0, %v1450
        %v1452 = vpop.f32.mrb[0].mxu0
        %v1453 = vpop.f32.mrb[0].mxu0
        %1454 = vdwg.mxu0
        %1455 = vmatprep.subr.bf16.mxu0 %v1369
        %1456 = vmatpush1.bf16.msra.mxu0 %v1368
        %1457 = vmatprep.subr.bf16.mxu0 %v1400
        %1458 = vmatpush1.bf16.msra.mxu0 %v1397
        %1459 = vmatprep.subr.bf16.mxu0 0
        %1460 = vmatpush1.bf16.msra.mxu0 0
        %1461 = vmatprep.subr.bf16.mxu0 0
        %1462 = vmatpush1.bf16.msra.mxu0 0
        %1463 = vmatprep.subr.bf16.mxu0 0
        %1464 = vmatpush1.bf16.msra.mxu0 0
        %1465 = vmatprep.subr.bf16.mxu0 0
        %1466 = vmatpush1.bf16.msra.mxu0 0
        %1467 = vmatprep.subr.bf16.mxu0 0
        %1468 = vmatpush1.bf16.msra.mxu0 0
        %1469 = vmatprep.subr.bf16.mxu0 0
        %1470 = vmatpush1.bf16.msra.mxu0 0
        %1471 = vmatprep.subr.bf16.mxu0 0
        %1472 = vmatpush1.bf16.msra.mxu0 0
        %1473 = vmatprep.subr.bf16.mxu0 0
        %1474 = vmatpush1.bf16.msra.mxu0 0
        %1475 = vmatprep.subr.bf16.mxu0 0
        %1476 = vmatpush1.bf16.msra.mxu0 0
        %1477 = vmatprep.subr.bf16.mxu0 0
        %1478 = vmatpush1.bf16.msra.mxu0 0
        %1479 = vmatprep.subr.bf16.mxu0 0
        %1480 = vmatpush1.bf16.msra.mxu0 0
        %1481 = vmatprep.subr.bf16.mxu0 0
        %1482 = vmatpush1.bf16.msra.mxu0 0
        %1483 = vmatprep.subr.bf16.mxu0 0
        %1484 = vmatpush1.bf16.msra.mxu0 0
        %1485 = vmatprep.subr.bf16.mxu0 0
        %1486 = vmatpush1.bf16.msra.mxu0 0
        %1487 = vmatprep.mubr.bf16.mxu0 0
        %1488 = vmatmul.mubr.bf16.gmra.mrb[0].mxu0 %v537
        %v1489 = vpop.f32.mrb[0].mxu0
        %v1490 = vadd.f32 0.0, %v1489
        %v1491 = vpop.f32.mrb[0].mxu0
        %v1492 = vadd.f32 0.0, %v1491
        %v1493 = vpop.f32.mrb[0].mxu0
        %v1494 = vpop.f32.mrb[0].mxu0
        %1495 = vdwg.mxu0
        %1496 = vmatprep.subr.bf16.mxu0 %v1371
        %1497 = vmatpush1.bf16.msra.mxu0 %v1370
        %1498 = vmatprep.subr.bf16.mxu0 %v1406
        %1499 = vmatpush1.bf16.msra.mxu0 %v1403
        %1500 = vmatprep.subr.bf16.mxu0 0
        %1501 = vmatpush1.bf16.msra.mxu0 0
        %1502 = vmatprep.subr.bf16.mxu0 0
        %1503 = vmatpush1.bf16.msra.mxu0 0
        %1504 = vmatprep.subr.bf16.mxu0 0
        %1505 = vmatpush1.bf16.msra.mxu0 0
        %1506 = vmatprep.subr.bf16.mxu0 0
        %1507 = vmatpush1.bf16.msra.mxu0 0
        %1508 = vmatprep.subr.bf16.mxu0 0
        %1509 = vmatpush1.bf16.msra.mxu0 0
        %1510 = vmatprep.subr.bf16.mxu0 0
        %1511 = vmatpush1.bf16.msra.mxu0 0
        %1512 = vmatprep.subr.bf16.mxu0 0
        %1513 = vmatpush1.bf16.msra.mxu0 0
        %1514 = vmatprep.subr.bf16.mxu0 0
        %1515 = vmatpush1.bf16.msra.mxu0 0
        %1516 = vmatprep.subr.bf16.mxu0 0
        %1517 = vmatpush1.bf16.msra.mxu0 0
        %1518 = vmatprep.subr.bf16.mxu0 0
        %1519 = vmatpush1.bf16.msra.mxu0 0
        %1520 = vmatprep.subr.bf16.mxu0 0
        %1521 = vmatpush1.bf16.msra.mxu0 0
        %1522 = vmatprep.subr.bf16.mxu0 0
        %1523 = vmatpush1.bf16.msra.mxu0 0
        %1524 = vmatprep.subr.bf16.mxu0 0
        %1525 = vmatpush1.bf16.msra.mxu0 0
        %1526 = vmatprep.subr.bf16.mxu0 0
        %1527 = vmatpush1.bf16.msra.mxu0 0
        %1528 = vmatprep.mubr.bf16.mxu0 0
        %1529 = vmatmul.mubr.bf16.gmra.mrb[0].mxu0 %v537
        %v1530 = vpop.f32.mrb[0].mxu0
        %v1531 = vadd.f32 0.0, %v1530
        %v1532 = vpop.f32.mrb[0].mxu0
        %v1533 = vadd.f32 0.0, %v1532
        %v1534 = vpop.f32.mrb[0].mxu0
        %v1535 = vpop.f32.mrb[0].mxu0
        %1536 = vdwg.mxu0
        %1537 = vmatprep.subr.bf16.mxu0 %v1373
        %1538 = vmatpush1.bf16.msra.mxu0 %v1372
        %1539 = vmatprep.subr.bf16.mxu0 %v1412
        %1540 = vmatpush1.bf16.msra.mxu0 %v1409
        %1541 = vmatprep.subr.bf16.mxu0 0
        %1542 = vmatpush1.bf16.msra.mxu0 0
        %1543 = vmatprep.subr.bf16.mxu0 0
        %1544 = vmatpush1.bf16.msra.mxu0 0
        %1545 = vmatprep.subr.bf16.mxu0 0
        %1546 = vmatpush1.bf16.msra.mxu0 0
        %1547 = vmatprep.subr.bf16.mxu0 0
        %1548 = vmatpush1.bf16.msra.mxu0 0
        %1549 = vmatprep.subr.bf16.mxu0 0
        %1550 = vmatpush1.bf16.msra.mxu0 0
        %1551 = vmatprep.subr.bf16.mxu0 0
        %1552 = vmatpush1.bf16.msra.mxu0 0
        %1553 = vmatprep.subr.bf16.mxu0 0
        %1554 = vmatpush1.bf16.msra.mxu0 0
        %1555 = vmatprep.subr.bf16.mxu0 0
        %1556 = vmatpush1.bf16.msra.mxu0 0
        %1557 = vmatprep.subr.bf16.mxu0 0
        %1558 = vmatpush1.bf16.msra.mxu0 0
        %1559 = vmatprep.subr.bf16.mxu0 0
        %1560 = vmatpush1.bf16.msra.mxu0 0
        %1561 = vmatprep.subr.bf16.mxu0 0
        %1562 = vmatpush1.bf16.msra.mxu0 0
        %1563 = vmatprep.subr.bf16.mxu0 0
        %1564 = vmatpush1.bf16.msra.mxu0 0
        %1565 = vmatprep.subr.bf16.mxu0 0
        %1566 = vmatpush1.bf16.msra.mxu0 0
        %1567 = vmatprep.subr.bf16.mxu0 0
        %1568 = vmatpush1.bf16.msra.mxu0 0
        %1569 = vmatprep.mubr.bf16.mxu0 0
        %1570 = vmatmul.mubr.bf16.gmra.mrb[0].mxu0 %v537
        %v1571 = vpop.f32.mrb[0].mxu0
        %v1572 = vadd.f32 0.0, %v1571
        %v1573 = vpop.f32.mrb[0].mxu0
        %v1574 = vadd.f32 0.0, %v1573
        %v1575 = vpop.f32.mrb[0].mxu0
        %v1576 = vpop.f32.mrb[0].mxu0
        %1577 = vdwg.mxu0
        %v1578 = vmax.f32 %v1293, %v1449
        %v1579 = vmax.f32 %v1294, %v1451
        %v1580 = vmax.f32 %v1295, %v1490
        %v1581 = vmax.f32 %v1296, %v1492
        %v1582 = vmax.f32 %v1297, %v1531
        %v1583 = vmax.f32 %v1298, %v1533
        %v1584 = vmax.f32 %v1299, %v1572
        %v1585 = vmax.f32 %v1300, %v1574
        %s1586 = scalar_lea.vmem %s422, 512 [#allocation2]
        %v1587 = vld [vmem:[%s1586] sm:$0xff]
        %v1588 = vld [vmem:[%s1586 + $0x8] sm:$0xff]
        %v1589 = vld [vmem:[%s1586 + $0x10] sm:$0xff]
        %v1590 = vld [vmem:[%s1586 + $0x18] sm:$0xff]
        %v1591 = vld [vmem:[%s1586 + $0x20] sm:$0xff]
        %v1592 = vld [vmem:[%s1586 + $0x28] sm:$0xff]
        %v1593 = vld [vmem:[%s1586 + $0x30] sm:$0xff]
        %v1594 = vld [vmem:[%s1586 + $0x38] sm:$0xff]
        %v1595 = vld [vmem:[%s1586 + $0x40] sm:$0xff]
        %v1596 = vld [vmem:[%s1586 + $0x48] sm:$0xff]
        %v1597 = vld [vmem:[%s1586 + $0x50] sm:$0xff]
        %v1598 = vld [vmem:[%s1586 + $0x58] sm:$0xff]
        %v1599 = vld [vmem:[%s1586 + $0x60] sm:$0x33]
        %v1600 = vld [vmem:[%s1586 + $0x68] sm:$0x33]
        %v1601 = vld [vmem:[%s1586 + $0x70] sm:$0x33]
        %v1602 = vld [vmem:[%s1586 + $0x78] sm:$0x33]
        %v1619 = vunpack.c.l.b16 %v1587
        %v1620 = vunpack.c.h.b16 %v1587
        %v1621 = vunpack.c.l.b16 %v1588
        %v1622 = vunpack.c.h.b16 %v1588
        %v1623 = vunpack.c.l.b16 %v1589
        %v1624 = vunpack.c.h.b16 %v1589
        %v1625 = vunpack.c.l.b16 %v1590
        %v1626 = vunpack.c.h.b16 %v1590
        %v1627 = vunpack.c.l.b16 %v1591
        %v1628 = vunpack.c.h.b16 %v1591
        %v1629 = vunpack.c.l.b16 %v1592
        %v1630 = vunpack.c.h.b16 %v1592
        %v1631 = vunpack.c.l.b16 %v1593
        %v1632 = vunpack.c.h.b16 %v1593
        %v1633 = vunpack.c.l.b16 %v1594
        %v1634 = vunpack.c.h.b16 %v1594
        %v1635 = vunpack.c.l.b16 %v1595
        %v1636 = vunpack.c.h.b16 %v1595
        %v1637 = vunpack.c.l.b16 %v1596
        %v1638 = vunpack.c.h.b16 %v1596
        %v1639 = vunpack.c.l.b16 %v1597
        %v1640 = vunpack.c.h.b16 %v1597
        %v1641 = vunpack.c.l.b16 %v1598
        %v1642 = vunpack.c.h.b16 %v1598
        %v1643 = vunpack.c.l.b16 %v1599
        %v1644 = vunpack.c.h.b16 %v1599
        %v1645 = vunpack.c.l.b16 %v1600
        %v1646 = vunpack.c.h.b16 %v1600
        %v1647 = vunpack.c.l.b16 %v1601
        %v1648 = vunpack.c.h.b16 %v1601
        %v1649 = vunpack.c.l.b16 %v1602
        %v1650 = vunpack.c.h.b16 %v1602
        %v1651 = vpack.c.b16 %v1627, %v1619
        %v1652 = vpack.c.b16 %v1628, %v1620
        %v1653 = vpack.c.b16 %v1629, %v1621
        %v1654 = vpack.c.b16 %v1630, %v1622
        %v1655 = vpack.c.b16 %v1631, %v1623
        %v1656 = vpack.c.b16 %v1632, %v1624
        %v1657 = vpack.c.b16 %v1633, %v1625
        %v1658 = vpack.c.b16 %v1634, %v1626
        %v1659 = vpack.c.b16 %v1643, %v1635
        %v1660 = vpack.c.b16 %v1644, %v1636
        %v1661 = vpack.c.b16 %v1645, %v1637
        %v1662 = vpack.c.b16 %v1646, %v1638
        %v1663 = vpack.c.b16 %v1647, %v1639
        %v1664 = vpack.c.b16 %v1648, %v1640
        %v1665 = vpack.c.b16 %v1649, %v1641
        %v1666 = vpack.c.b16 %v1650, %v1642
        %v1676 = vand.u32 %v1659, %v542
        %v1679 = vand.u32 %v1660, %v542
        %v1682 = vand.u32 %v1661, %v542
        %v1685 = vand.u32 %v1662, %v542
        %v1688 = vand.u32 %v1663, %v542
        %v1691 = vand.u32 %v1664, %v542
        %v1694 = vand.u32 %v1665, %v542
        %v1697 = vand.u32 %v1666, %v542
        %1699 = vmatprep.subr.bf16.mxu0 %v1652
        %1700 = vmatpush1.bf16.msra.mxu0 %v1651
        %1701 = vmatprep.subr.bf16.mxu0 %v1679
        %1702 = vmatpush1.bf16.msra.mxu0 %v1676
        %1703 = vmatprep.subr.bf16.mxu0 0
        %1704 = vmatpush1.bf16.msra.mxu0 0
        %1705 = vmatprep.subr.bf16.mxu0 0
        %1706 = vmatpush1.bf16.msra.mxu0 0
        %1707 = vmatprep.subr.bf16.mxu0 0
        %1708 = vmatpush1.bf16.msra.mxu0 0
        %1709 = vmatprep.subr.bf16.mxu0 0
        %1710 = vmatpush1.bf16.msra.mxu0 0
        %1711 = vmatprep.subr.bf16.mxu0 0
        %1712 = vmatpush1.bf16.msra.mxu0 0
        %1713 = vmatprep.subr.bf16.mxu0 0
        %1714 = vmatpush1.bf16.msra.mxu0 0
        %1715 = vmatprep.subr.bf16.mxu0 0
        %1716 = vmatpush1.bf16.msra.mxu0 0
        %1717 = vmatprep.subr.bf16.mxu0 0
        %1718 = vmatpush1.bf16.msra.mxu0 0
        %1719 = vmatprep.subr.bf16.mxu0 0
        %1720 = vmatpush1.bf16.msra.mxu0 0
        %1721 = vmatprep.subr.bf16.mxu0 0
        %1722 = vmatpush1.bf16.msra.mxu0 0
        %1723 = vmatprep.subr.bf16.mxu0 0
        %1724 = vmatpush1.bf16.msra.mxu0 0
        %1725 = vmatprep.subr.bf16.mxu0 0
        %1726 = vmatpush1.bf16.msra.mxu0 0
        %1727 = vmatprep.subr.bf16.mxu0 0
        %1728 = vmatpush1.bf16.msra.mxu0 0
        %1729 = vmatprep.subr.bf16.mxu0 0
        %1730 = vmatpush1.bf16.msra.mxu0 0
        %1731 = vmatprep.mubr.bf16.mxu0 0
        %1732 = vmatmul.mubr.bf16.gmra.mrb[0].mxu0 %v537
        %v1733 = vpop.f32.mrb[0].mxu0
        %v1734 = vadd.f32 0.0, %v1733
        %v1735 = vpop.f32.mrb[0].mxu0
        %v1736 = vadd.f32 0.0, %v1735
        %v1737 = vpop.f32.mrb[0].mxu0
        %v1738 = vpop.f32.mrb[0].mxu0
        %1739 = vdwg.mxu0
        %1740 = vmatprep.subr.bf16.mxu0 %v1654
        %1741 = vmatpush1.bf16.msra.mxu0 %v1653
        %1742 = vmatprep.subr.bf16.mxu0 %v1685
        %1743 = vmatpush1.bf16.msra.mxu0 %v1682
        %1744 = vmatprep.subr.bf16.mxu0 0
        %1745 = vmatpush1.bf16.msra.mxu0 0
        %1746 = vmatprep.subr.bf16.mxu0 0
        %1747 = vmatpush1.bf16.msra.mxu0 0
        %1748 = vmatprep.subr.bf16.mxu0 0
        %1749 = vmatpush1.bf16.msra.mxu0 0
        %1750 = vmatprep.subr.bf16.mxu0 0
        %1751 = vmatpush1.bf16.msra.mxu0 0
        %1752 = vmatprep.subr.bf16.mxu0 0
        %1753 = vmatpush1.bf16.msra.mxu0 0
        %1754 = vmatprep.subr.bf16.mxu0 0
        %1755 = vmatpush1.bf16.msra.mxu0 0
        %1756 = vmatprep.subr.bf16.mxu0 0
        %1757 = vmatpush1.bf16.msra.mxu0 0
        %1758 = vmatprep.subr.bf16.mxu0 0
        %1759 = vmatpush1.bf16.msra.mxu0 0
        %1760 = vmatprep.subr.bf16.mxu0 0
        %1761 = vmatpush1.bf16.msra.mxu0 0
        %1762 = vmatprep.subr.bf16.mxu0 0
        %1763 = vmatpush1.bf16.msra.mxu0 0
        %1764 = vmatprep.subr.bf16.mxu0 0
        %1765 = vmatpush1.bf16.msra.mxu0 0
        %1766 = vmatprep.subr.bf16.mxu0 0
        %1767 = vmatpush1.bf16.msra.mxu0 0
        %1768 = vmatprep.subr.bf16.mxu0 0
        %1769 = vmatpush1.bf16.msra.mxu0 0
        %1770 = vmatprep.subr.bf16.mxu0 0
        %1771 = vmatpush1.bf16.msra.mxu0 0
        %1772 = vmatprep.mubr.bf16.mxu0 0
        %1773 = vmatmul.mubr.bf16.gmra.mrb[0].mxu0 %v537
        %v1774 = vpop.f32.mrb[0].mxu0
        %v1775 = vadd.f32 0.0, %v1774
        %v1776 = vpop.f32.mrb[0].mxu0
        %v1777 = vadd.f32 0.0, %v1776
        %v1778 = vpop.f32.mrb[0].mxu0
        %v1779 = vpop.f32.mrb[0].mxu0
        %1780 = vdwg.mxu0
        %1781 = vmatprep.subr.bf16.mxu0 %v1656
        %1782 = vmatpush1.bf16.msra.mxu0 %v1655
        %1783 = vmatprep.subr.bf16.mxu0 %v1691
        %1784 = vmatpush1.bf16.msra.mxu0 %v1688
        %1785 = vmatprep.subr.bf16.mxu0 0
        %1786 = vmatpush1.bf16.msra.mxu0 0
        %1787 = vmatprep.subr.bf16.mxu0 0
        %1788 = vmatpush1.bf16.msra.mxu0 0
        %1789 = vmatprep.subr.bf16.mxu0 0
        %1790 = vmatpush1.bf16.msra.mxu0 0
        %1791 = vmatprep.subr.bf16.mxu0 0
        %1792 = vmatpush1.bf16.msra.mxu0 0
        %1793 = vmatprep.subr.bf16.mxu0 0
        %1794 = vmatpush1.bf16.msra.mxu0 0
        %1795 = vmatprep.subr.bf16.mxu0 0
        %1796 = vmatpush1.bf16.msra.mxu0 0
        %1797 = vmatprep.subr.bf16.mxu0 0
        %1798 = vmatpush1.bf16.msra.mxu0 0
        %1799 = vmatprep.subr.bf16.mxu0 0
        %1800 = vmatpush1.bf16.msra.mxu0 0
        %1801 = vmatprep.subr.bf16.mxu0 0
        %1802 = vmatpush1.bf16.msra.mxu0 0
        %1803 = vmatprep.subr.bf16.mxu0 0
        %1804 = vmatpush1.bf16.msra.mxu0 0
        %1805 = vmatprep.subr.bf16.mxu0 0
        %1806 = vmatpush1.bf16.msra.mxu0 0
        %1807 = vmatprep.subr.bf16.mxu0 0
        %1808 = vmatpush1.bf16.msra.mxu0 0
        %1809 = vmatprep.subr.bf16.mxu0 0
        %1810 = vmatpush1.bf16.msra.mxu0 0
        %1811 = vmatprep.subr.bf16.mxu0 0
        %1812 = vmatpush1.bf16.msra.mxu0 0
        %1813 = vmatprep.mubr.bf16.mxu0 0
        %1814 = vmatmul.mubr.bf16.gmra.mrb[0].mxu0 %v537
        %v1815 = vpop.f32.mrb[0].mxu0
        %v1816 = vadd.f32 0.0, %v1815
        %v1817 = vpop.f32.mrb[0].mxu0
        %v1818 = vadd.f32 0.0, %v1817
        %v1819 = vpop.f32.mrb[0].mxu0
        %v1820 = vpop.f32.mrb[0].mxu0
        %1821 = vdwg.mxu0
        %1822 = vmatprep.subr.bf16.mxu0 %v1658
        %1823 = vmatpush1.bf16.msra.mxu0 %v1657
        %1824 = vmatprep.subr.bf16.mxu0 %v1697
        %1825 = vmatpush1.bf16.msra.mxu0 %v1694
        %1826 = vmatprep.subr.bf16.mxu0 0
        %1827 = vmatpush1.bf16.msra.mxu0 0
        %1828 = vmatprep.subr.bf16.mxu0 0
        %1829 = vmatpush1.bf16.msra.mxu0 0
        %1830 = vmatprep.subr.bf16.mxu0 0
        %1831 = vmatpush1.bf16.msra.mxu0 0
        %1832 = vmatprep.subr.bf16.mxu0 0
        %1833 = vmatpush1.bf16.msra.mxu0 0
        %1834 = vmatprep.subr.bf16.mxu0 0
        %1835 = vmatpush1.bf16.msra.mxu0 0
        %1836 = vmatprep.subr.bf16.mxu0 0
        %1837 = vmatpush1.bf16.msra.mxu0 0
        %1838 = vmatprep.subr.bf16.mxu0 0
        %1839 = vmatpush1.bf16.msra.mxu0 0
        %1840 = vmatprep.subr.bf16.mxu0 0
        %1841 = vmatpush1.bf16.msra.mxu0 0
        %1842 = vmatprep.subr.bf16.mxu0 0
        %1843 = vmatpush1.bf16.msra.mxu0 0
        %1844 = vmatprep.subr.bf16.mxu0 0
        %1845 = vmatpush1.bf16.msra.mxu0 0
        %1846 = vmatprep.subr.bf16.mxu0 0
        %1847 = vmatpush1.bf16.msra.mxu0 0
        %1848 = vmatprep.subr.bf16.mxu0 0
        %1849 = vmatpush1.bf16.msra.mxu0 0
        %1850 = vmatprep.subr.bf16.mxu0 0
        %1851 = vmatpush1.bf16.msra.mxu0 0
        %1852 = vmatprep.subr.bf16.mxu0 0
        %1853 = vmatpush1.bf16.msra.mxu0 0
        %1854 = vmatprep.mubr.bf16.mxu0 0
        %1855 = vmatmul.mubr.bf16.gmra.mrb[0].mxu0 %v537
        %v1856 = vpop.f32.mrb[0].mxu0
        %v1857 = vadd.f32 0.0, %v1856
        %v1858 = vpop.f32.mrb[0].mxu0
        %v1859 = vadd.f32 0.0, %v1858
        %v1860 = vpop.f32.mrb[0].mxu0
        %v1861 = vpop.f32.mrb[0].mxu0
        %1862 = vdwg.mxu0
        %v1863 = vmax.f32 %v1578, %v1734
        %v1864 = vmax.f32 %v1579, %v1736
        %v1865 = vmax.f32 %v1580, %v1775
        %v1866 = vmax.f32 %v1581, %v1777
        %v1867 = vmax.f32 %v1582, %v1816
        %v1868 = vmax.f32 %v1583, %v1818
        %v1869 = vmax.f32 %v1584, %v1857
        %v1870 = vmax.f32 %v1585, %v1859
        %s1871 = scalar_lea.vmem %s422, 640 [#allocation2]
        %v1872 = vld [vmem:[%s1871] sm:$0xff]
        %v1873 = vld [vmem:[%s1871 + $0x8] sm:$0xff]
        %v1874 = vld [vmem:[%s1871 + $0x10] sm:$0xff]
        %v1875 = vld [vmem:[%s1871 + $0x18] sm:$0xff]
        %v1876 = vld [vmem:[%s1871 + $0x20] sm:$0xff]
        %v1877 = vld [vmem:[%s1871 + $0x28] sm:$0xff]
        %v1878 = vld [vmem:[%s1871 + $0x30] sm:$0xff]
        %v1879 = vld [vmem:[%s1871 + $0x38] sm:$0xff]
        %v1880 = vld [vmem:[%s1871 + $0x40] sm:$0xff]
        %v1881 = vld [vmem:[%s1871 + $0x48] sm:$0xff]
        %v1882 = vld [vmem:[%s1871 + $0x50] sm:$0xff]
        %v1883 = vld [vmem:[%s1871 + $0x58] sm:$0xff]
        %v1884 = vld [vmem:[%s1871 + $0x60] sm:$0x33]
        %v1885 = vld [vmem:[%s1871 + $0x68] sm:$0x33]
        %v1886 = vld [vmem:[%s1871 + $0x70] sm:$0x33]
        %v1887 = vld [vmem:[%s1871 + $0x78] sm:$0x33]
        %v1904 = vunpack.c.l.b16 %v1872
        %v1905 = vunpack.c.h.b16 %v1872
        %v1906 = vunpack.c.l.b16 %v1873
        %v1907 = vunpack.c.h.b16 %v1873
        %v1908 = vunpack.c.l.b16 %v1874
        %v1909 = vunpack.c.h.b16 %v1874
        %v1910 = vunpack.c.l.b16 %v1875
        %v1911 = vunpack.c.h.b16 %v1875
        %v1912 = vunpack.c.l.b16 %v1876
        %v1913 = vunpack.c.h.b16 %v1876
        %v1914 = vunpack.c.l.b16 %v1877
        %v1915 = vunpack.c.h.b16 %v1877
        %v1916 = vunpack.c.l.b16 %v1878
        %v1917 = vunpack.c.h.b16 %v1878
        %v1918 = vunpack.c.l.b16 %v1879
        %v1919 = vunpack.c.h.b16 %v1879
        %v1920 = vunpack.c.l.b16 %v1880
        %v1921 = vunpack.c.h.b16 %v1880
        %v1922 = vunpack.c.l.b16 %v1881
        %v1923 = vunpack.c.h.b16 %v1881
        %v1924 = vunpack.c.l.b16 %v1882
        %v1925 = vunpack.c.h.b16 %v1882
        %v1926 = vunpack.c.l.b16 %v1883
        %v1927 = vunpack.c.h.b16 %v1883
        %v1928 = vunpack.c.l.b16 %v1884
        %v1929 = vunpack.c.h.b16 %v1884
        %v1930 = vunpack.c.l.b16 %v1885
        %v1931 = vunpack.c.h.b16 %v1885
        %v1932 = vunpack.c.l.b16 %v1886
        %v1933 = vunpack.c.h.b16 %v1886
        %v1934 = vunpack.c.l.b16 %v1887
        %v1935 = vunpack.c.h.b16 %v1887
        %v1936 = vpack.c.b16 %v1912, %v1904
        %v1937 = vpack.c.b16 %v1913, %v1905
        %v1938 = vpack.c.b16 %v1914, %v1906
        %v1939 = vpack.c.b16 %v1915, %v1907
        %v1940 = vpack.c.b16 %v1916, %v1908
        %v1941 = vpack.c.b16 %v1917, %v1909
        %v1942 = vpack.c.b16 %v1918, %v1910
        %v1943 = vpack.c.b16 %v1919, %v1911
        %v1944 = vpack.c.b16 %v1928, %v1920
        %v1945 = vpack.c.b16 %v1929, %v1921
        %v1946 = vpack.c.b16 %v1930, %v1922
        %v1947 = vpack.c.b16 %v1931, %v1923
        %v1948 = vpack.c.b16 %v1932, %v1924
        %v1949 = vpack.c.b16 %v1933, %v1925
        %v1950 = vpack.c.b16 %v1934, %v1926
        %v1951 = vpack.c.b16 %v1935, %v1927
        %v1961 = vand.u32 %v1944, %v542
        %v1964 = vand.u32 %v1945, %v542
        %v1967 = vand.u32 %v1946, %v542
        %v1970 = vand.u32 %v1947, %v542
        %v1973 = vand.u32 %v1948, %v542
        %v1976 = vand.u32 %v1949, %v542
        %v1979 = vand.u32 %v1950, %v542
        %v1982 = vand.u32 %v1951, %v542
        %1984 = vmatprep.subr.bf16.mxu0 %v1937
        %1985 = vmatpush1.bf16.msra.mxu0 %v1936
        %1986 = vmatprep.subr.bf16.mxu0 %v1964
        %1987 = vmatpush1.bf16.msra.mxu0 %v1961
        %1988 = vmatprep.subr.bf16.mxu0 0
        %1989 = vmatpush1.bf16.msra.mxu0 0
        %1990 = vmatprep.subr.bf16.mxu0 0
        %1991 = vmatpush1.bf16.msra.mxu0 0
        %1992 = vmatprep.subr.bf16.mxu0 0
        %1993 = vmatpush1.bf16.msra.mxu0 0
        %1994 = vmatprep.subr.bf16.mxu0 0
        %1995 = vmatpush1.bf16.msra.mxu0 0
        %1996 = vmatprep.subr.bf16.mxu0 0
        %1997 = vmatpush1.bf16.msra.mxu0 0
        %1998 = vmatprep.subr.bf16.mxu0 0
        %1999 = vmatpush1.bf16.msra.mxu0 0
        %2000 = vmatprep.subr.bf16.mxu0 0
        %2001 = vmatpush1.bf16.msra.mxu0 0
        %2002 = vmatprep.subr.bf16.mxu0 0
        %2003 = vmatpush1.bf16.msra.mxu0 0
        %2004 = vmatprep.subr.bf16.mxu0 0
        %2005 = vmatpush1.bf16.msra.mxu0 0
        %2006 = vmatprep.subr.bf16.mxu0 0
        %2007 = vmatpush1.bf16.msra.mxu0 0
        %2008 = vmatprep.subr.bf16.mxu0 0
        %2009 = vmatpush1.bf16.msra.mxu0 0
        %2010 = vmatprep.subr.bf16.mxu0 0
        %2011 = vmatpush1.bf16.msra.mxu0 0
        %2012 = vmatprep.subr.bf16.mxu0 0
        %2013 = vmatpush1.bf16.msra.mxu0 0
        %2014 = vmatprep.subr.bf16.mxu0 0
        %2015 = vmatpush1.bf16.msra.mxu0 0
        %2016 = vmatprep.mubr.bf16.mxu0 0
        %2017 = vmatmul.mubr.bf16.gmra.mrb[0].mxu0 %v537
        %v2018 = vpop.f32.mrb[0].mxu0
        %v2019 = vadd.f32 0.0, %v2018
        %v2020 = vpop.f32.mrb[0].mxu0
        %v2021 = vadd.f32 0.0, %v2020
        %v2022 = vpop.f32.mrb[0].mxu0
        %v2023 = vpop.f32.mrb[0].mxu0
        %2024 = vdwg.mxu0
        %2025 = vmatprep.subr.bf16.mxu0 %v1939
        %2026 = vmatpush1.bf16.msra.mxu0 %v1938
        %2027 = vmatprep.subr.bf16.mxu0 %v1970
        %2028 = vmatpush1.bf16.msra.mxu0 %v1967
        %2029 = vmatprep.subr.bf16.mxu0 0
        %2030 = vmatpush1.bf16.msra.mxu0 0
        %2031 = vmatprep.subr.bf16.mxu0 0
        %2032 = vmatpush1.bf16.msra.mxu0 0
        %2033 = vmatprep.subr.bf16.mxu0 0
        %2034 = vmatpush1.bf16.msra.mxu0 0
        %2035 = vmatprep.subr.bf16.mxu0 0
        %2036 = vmatpush1.bf16.msra.mxu0 0
        %2037 = vmatprep.subr.bf16.mxu0 0
        %2038 = vmatpush1.bf16.msra.mxu0 0
        %2039 = vmatprep.subr.bf16.mxu0 0
        %2040 = vmatpush1.bf16.msra.mxu0 0
        %2041 = vmatprep.subr.bf16.mxu0 0
        %2042 = vmatpush1.bf16.msra.mxu0 0
        %2043 = vmatprep.subr.bf16.mxu0 0
        %2044 = vmatpush1.bf16.msra.mxu0 0
        %2045 = vmatprep.subr.bf16.mxu0 0
        %2046 = vmatpush1.bf16.msra.mxu0 0
        %2047 = vmatprep.subr.bf16.mxu0 0
        %2048 = vmatpush1.bf16.msra.mxu0 0
        %2049 = vmatprep.subr.bf16.mxu0 0
        %2050 = vmatpush1.bf16.msra.mxu0 0
        %2051 = vmatprep.subr.bf16.mxu0 0
        %2052 = vmatpush1.bf16.msra.mxu0 0
        %2053 = vmatprep.subr.bf16.mxu0 0
        %2054 = vmatpush1.bf16.msra.mxu0 0
        %2055 = vmatprep.subr.bf16.mxu0 0
        %2056 = vmatpush1.bf16.msra.mxu0 0
        %2057 = vmatprep.mubr.bf16.mxu0 0
        %2058 = vmatmul.mubr.bf16.gmra.mrb[0].mxu0 %v537
        %v2059 = vpop.f32.mrb[0].mxu0
        %v2060 = vadd.f32 0.0, %v2059
        %v2061 = vpop.f32.mrb[0].mxu0
        %v2062 = vadd.f32 0.0, %v2061
        %v2063 = vpop.f32.mrb[0].mxu0
        %v2064 = vpop.f32.mrb[0].mxu0
        %2065 = vdwg.mxu0
        %2066 = vmatprep.subr.bf16.mxu0 %v1941
        %2067 = vmatpush1.bf16.msra.mxu0 %v1940
        %2068 = vmatprep.subr.bf16.mxu0 %v1976
        %2069 = vmatpush1.bf16.msra.mxu0 %v1973
        %2070 = vmatprep.subr.bf16.mxu0 0
        %2071 = vmatpush1.bf16.msra.mxu0 0
        %2072 = vmatprep.subr.bf16.mxu0 0
        %2073 = vmatpush1.bf16.msra.mxu0 0
        %2074 = vmatprep.subr.bf16.mxu0 0
        %2075 = vmatpush1.bf16.msra.mxu0 0
        %2076 = vmatprep.subr.bf16.mxu0 0
        %2077 = vmatpush1.bf16.msra.mxu0 0
        %2078 = vmatprep.subr.bf16.mxu0 0
        %2079 = vmatpush1.bf16.msra.mxu0 0
        %2080 = vmatprep.subr.bf16.mxu0 0
        %2081 = vmatpush1.bf16.msra.mxu0 0
        %2082 = vmatprep.subr.bf16.mxu0 0
        %2083 = vmatpush1.bf16.msra.mxu0 0
        %2084 = vmatprep.subr.bf16.mxu0 0
        %2085 = vmatpush1.bf16.msra.mxu0 0
        %2086 = vmatprep.subr.bf16.mxu0 0
        %2087 = vmatpush1.bf16.msra.mxu0 0
        %2088 = vmatprep.subr.bf16.mxu0 0
        %2089 = vmatpush1.bf16.msra.mxu0 0
        %2090 = vmatprep.subr.bf16.mxu0 0
        %2091 = vmatpush1.bf16.msra.mxu0 0
        %2092 = vmatprep.subr.bf16.mxu0 0
        %2093 = vmatpush1.bf16.msra.mxu0 0
        %2094 = vmatprep.subr.bf16.mxu0 0
        %2095 = vmatpush1.bf16.msra.mxu0 0
        %2096 = vmatprep.subr.bf16.mxu0 0
        %2097 = vmatpush1.bf16.msra.mxu0 0
        %2098 = vmatprep.mubr.bf16.mxu0 0
        %2099 = vmatmul.mubr.bf16.gmra.mrb[0].mxu0 %v537
        %v2100 = vpop.f32.mrb[0].mxu0
        %v2101 = vadd.f32 0.0, %v2100
        %v2102 = vpop.f32.mrb[0].mxu0
        %v2103 = vadd.f32 0.0, %v2102
        %v2104 = vpop.f32.mrb[0].mxu0
        %v2105 = vpop.f32.mrb[0].mxu0
        %2106 = vdwg.mxu0
        %2107 = vmatprep.subr.bf16.mxu0 %v1943
        %2108 = vmatpush1.bf16.msra.mxu0 %v1942
        %2109 = vmatprep.subr.bf16.mxu0 %v1982
        %2110 = vmatpush1.bf16.msra.mxu0 %v1979
        %2111 = vmatprep.subr.bf16.mxu0 0
        %2112 = vmatpush1.bf16.msra.mxu0 0
        %2113 = vmatprep.subr.bf16.mxu0 0
        %2114 = vmatpush1.bf16.msra.mxu0 0
        %2115 = vmatprep.subr.bf16.mxu0 0
        %2116 = vmatpush1.bf16.msra.mxu0 0
        %2117 = vmatprep.subr.bf16.mxu0 0
        %2118 = vmatpush1.bf16.msra.mxu0 0
        %2119 = vmatprep.subr.bf16.mxu0 0
        %2120 = vmatpush1.bf16.msra.mxu0 0
        %2121 = vmatprep.subr.bf16.mxu0 0
        %2122 = vmatpush1.bf16.msra.mxu0 0
        %2123 = vmatprep.subr.bf16.mxu0 0
        %2124 = vmatpush1.bf16.msra.mxu0 0
        %2125 = vmatprep.subr.bf16.mxu0 0
        %2126 = vmatpush1.bf16.msra.mxu0 0
        %2127 = vmatprep.subr.bf16.mxu0 0
        %2128 = vmatpush1.bf16.msra.mxu0 0
        %2129 = vmatprep.subr.bf16.mxu0 0
        %2130 = vmatpush1.bf16.msra.mxu0 0
        %2131 = vmatprep.subr.bf16.mxu0 0
        %2132 = vmatpush1.bf16.msra.mxu0 0
        %2133 = vmatprep.subr.bf16.mxu0 0
        %2134 = vmatpush1.bf16.msra.mxu0 0
        %2135 = vmatprep.subr.bf16.mxu0 0
        %2136 = vmatpush1.bf16.msra.mxu0 0
        %2137 = vmatprep.subr.bf16.mxu0 0
        %2138 = vmatpush1.bf16.msra.mxu0 0
        %2139 = vmatprep.mubr.bf16.mxu0 0
        %2140 = vmatmul.mubr.bf16.gmra.mrb[0].mxu0 %v537
        %v2141 = vpop.f32.mrb[0].mxu0
        %v2142 = vadd.f32 0.0, %v2141
        %v2143 = vpop.f32.mrb[0].mxu0
        %v2144 = vadd.f32 0.0, %v2143
        %v2145 = vpop.f32.mrb[0].mxu0
        %v2146 = vpop.f32.mrb[0].mxu0
        %2147 = vdwg.mxu0
        %v2148 = vmax.f32 %v1863, %v2019
        %v2149 = vmax.f32 %v1864, %v2021
        %v2150 = vmax.f32 %v1865, %v2060
        %v2151 = vmax.f32 %v1866, %v2062
        %v2152 = vmax.f32 %v1867, %v2101
        %v2153 = vmax.f32 %v1868, %v2103
        %v2154 = vmax.f32 %v1869, %v2142
        %v2155 = vmax.f32 %v1870, %v2144
        %s2156 = scalar_lea.vmem %s422, 768 [#allocation2]
        %v2157 = vld [vmem:[%s2156] sm:$0xff]
        %v2158 = vld [vmem:[%s2156 + $0x8] sm:$0xff]
        %v2159 = vld [vmem:[%s2156 + $0x10] sm:$0xff]
        %v2160 = vld [vmem:[%s2156 + $0x18] sm:$0xff]
        %v2161 = vld [vmem:[%s2156 + $0x20] sm:$0xff]
        %v2162 = vld [vmem:[%s2156 + $0x28] sm:$0xff]
        %v2163 = vld [vmem:[%s2156 + $0x30] sm:$0xff]
        %v2164 = vld [vmem:[%s2156 + $0x38] sm:$0xff]
        %v2165 = vld [vmem:[%s2156 + $0x40] sm:$0xff]
        %v2166 = vld [vmem:[%s2156 + $0x48] sm:$0xff]
        %v2167 = vld [vmem:[%s2156 + $0x50] sm:$0xff]
        %v2168 = vld [vmem:[%s2156 + $0x58] sm:$0xff]
        %v2169 = vld [vmem:[%s2156 + $0x60] sm:$0x33]
        %v2170 = vld [vmem:[%s2156 + $0x68] sm:$0x33]
        %v2171 = vld [vmem:[%s2156 + $0x70] sm:$0x33]
        %v2172 = vld [vmem:[%s2156 + $0x78] sm:$0x33]
        %v2189 = vunpack.c.l.b16 %v2157
        %v2190 = vunpack.c.h.b16 %v2157
        %v2191 = vunpack.c.l.b16 %v2158
        %v2192 = vunpack.c.h.b16 %v2158
        %v2193 = vunpack.c.l.b16 %v2159
        %v2194 = vunpack.c.h.b16 %v2159
        %v2195 = vunpack.c.l.b16 %v2160
        %v2196 = vunpack.c.h.b16 %v2160
        %v2197 = vunpack.c.l.b16 %v2161
        %v2198 = vunpack.c.h.b16 %v2161
        %v2199 = vunpack.c.l.b16 %v2162
        %v2200 = vunpack.c.h.b16 %v2162
        %v2201 = vunpack.c.l.b16 %v2163
        %v2202 = vunpack.c.h.b16 %v2163
        %v2203 = vunpack.c.l.b16 %v2164
        %v2204 = vunpack.c.h.b16 %v2164
        %v2205 = vunpack.c.l.b16 %v2165
        %v2206 = vunpack.c.h.b16 %v2165
        %v2207 = vunpack.c.l.b16 %v2166
        %v2208 = vunpack.c.h.b16 %v2166
        %v2209 = vunpack.c.l.b16 %v2167
        %v2210 = vunpack.c.h.b16 %v2167
        %v2211 = vunpack.c.l.b16 %v2168
        %v2212 = vunpack.c.h.b16 %v2168
        %v2213 = vunpack.c.l.b16 %v2169
        %v2214 = vunpack.c.h.b16 %v2169
        %v2215 = vunpack.c.l.b16 %v2170
        %v2216 = vunpack.c.h.b16 %v2170
        %v2217 = vunpack.c.l.b16 %v2171
        %v2218 = vunpack.c.h.b16 %v2171
        %v2219 = vunpack.c.l.b16 %v2172
        %v2220 = vunpack.c.h.b16 %v2172
        %v2221 = vpack.c.b16 %v2197, %v2189
        %v2222 = vpack.c.b16 %v2198, %v2190
        %v2223 = vpack.c.b16 %v2199, %v2191
        %v2224 = vpack.c.b16 %v2200, %v2192
        %v2225 = vpack.c.b16 %v2201, %v2193
        %v2226 = vpack.c.b16 %v2202, %v2194
        %v2227 = vpack.c.b16 %v2203, %v2195
        %v2228 = vpack.c.b16 %v2204, %v2196
        %v2229 = vpack.c.b16 %v2213, %v2205
        %v2230 = vpack.c.b16 %v2214, %v2206
        %v2231 = vpack.c.b16 %v2215, %v2207
        %v2232 = vpack.c.b16 %v2216, %v2208
        %v2233 = vpack.c.b16 %v2217, %v2209
        %v2234 = vpack.c.b16 %v2218, %v2210
        %v2235 = vpack.c.b16 %v2219, %v2211
        %v2236 = vpack.c.b16 %v2220, %v2212
        %v2246 = vand.u32 %v2229, %v542
        %v2249 = vand.u32 %v2230, %v542
        %v2252 = vand.u32 %v2231, %v542
        %v2255 = vand.u32 %v2232, %v542
        %v2258 = vand.u32 %v2233, %v542
        %v2261 = vand.u32 %v2234, %v542
        %v2264 = vand.u32 %v2235, %v542
        %v2267 = vand.u32 %v2236, %v542
        %2269 = vmatprep.subr.bf16.mxu0 %v2222
        %2270 = vmatpush1.bf16.msra.mxu0 %v2221
        %2271 = vmatprep.subr.bf16.mxu0 %v2249
        %2272 = vmatpush1.bf16.msra.mxu0 %v2246
        %2273 = vmatprep.subr.bf16.mxu0 0
        %2274 = vmatpush1.bf16.msra.mxu0 0
        %2275 = vmatprep.subr.bf16.mxu0 0
        %2276 = vmatpush1.bf16.msra.mxu0 0
        %2277 = vmatprep.subr.bf16.mxu0 0
        %2278 = vmatpush1.bf16.msra.mxu0 0
        %2279 = vmatprep.subr.bf16.mxu0 0
        %2280 = vmatpush1.bf16.msra.mxu0 0
        %2281 = vmatprep.subr.bf16.mxu0 0
        %2282 = vmatpush1.bf16.msra.mxu0 0
        %2283 = vmatprep.subr.bf16.mxu0 0
        %2284 = vmatpush1.bf16.msra.mxu0 0
        %2285 = vmatprep.subr.bf16.mxu0 0
        %2286 = vmatpush1.bf16.msra.mxu0 0
        %2287 = vmatprep.subr.bf16.mxu0 0
        %2288 = vmatpush1.bf16.msra.mxu0 0
        %2289 = vmatprep.subr.bf16.mxu0 0
        %2290 = vmatpush1.bf16.msra.mxu0 0
        %2291 = vmatprep.subr.bf16.mxu0 0
        %2292 = vmatpush1.bf16.msra.mxu0 0
        %2293 = vmatprep.subr.bf16.mxu0 0
        %2294 = vmatpush1.bf16.msra.mxu0 0
        %2295 = vmatprep.subr.bf16.mxu0 0
        %2296 = vmatpush1.bf16.msra.mxu0 0
        %2297 = vmatprep.subr.bf16.mxu0 0
        %2298 = vmatpush1.bf16.msra.mxu0 0
        %2299 = vmatprep.subr.bf16.mxu0 0
        %2300 = vmatpush1.bf16.msra.mxu0 0
        %2301 = vmatprep.mubr.bf16.mxu0 0
        %2302 = vmatmul.mubr.bf16.gmra.mrb[0].mxu0 %v537
        %v2303 = vpop.f32.mrb[0].mxu0
        %v2304 = vadd.f32 0.0, %v2303
        %v2305 = vpop.f32.mrb[0].mxu0
        %v2306 = vadd.f32 0.0, %v2305
        %v2307 = vpop.f32.mrb[0].mxu0
        %v2308 = vpop.f32.mrb[0].mxu0
        %2309 = vdwg.mxu0
        %2310 = vmatprep.subr.bf16.mxu0 %v2224
        %2311 = vmatpush1.bf16.msra.mxu0 %v2223
        %2312 = vmatprep.subr.bf16.mxu0 %v2255
        %2313 = vmatpush1.bf16.msra.mxu0 %v2252
        %2314 = vmatprep.subr.bf16.mxu0 0
        %2315 = vmatpush1.bf16.msra.mxu0 0
        %2316 = vmatprep.subr.bf16.mxu0 0
        %2317 = vmatpush1.bf16.msra.mxu0 0
        %2318 = vmatprep.subr.bf16.mxu0 0
        %2319 = vmatpush1.bf16.msra.mxu0 0
        %2320 = vmatprep.subr.bf16.mxu0 0
        %2321 = vmatpush1.bf16.msra.mxu0 0
        %2322 = vmatprep.subr.bf16.mxu0 0
        %2323 = vmatpush1.bf16.msra.mxu0 0
        %2324 = vmatprep.subr.bf16.mxu0 0
        %2325 = vmatpush1.bf16.msra.mxu0 0
        %2326 = vmatprep.subr.bf16.mxu0 0
        %2327 = vmatpush1.bf16.msra.mxu0 0
        %2328 = vmatprep.subr.bf16.mxu0 0
        %2329 = vmatpush1.bf16.msra.mxu0 0
        %2330 = vmatprep.subr.bf16.mxu0 0
        %2331 = vmatpush1.bf16.msra.mxu0 0
        %2332 = vmatprep.subr.bf16.mxu0 0
        %2333 = vmatpush1.bf16.msra.mxu0 0
        %2334 = vmatprep.subr.bf16.mxu0 0
        %2335 = vmatpush1.bf16.msra.mxu0 0
        %2336 = vmatprep.subr.bf16.mxu0 0
        %2337 = vmatpush1.bf16.msra.mxu0 0
        %2338 = vmatprep.subr.bf16.mxu0 0
        %2339 = vmatpush1.bf16.msra.mxu0 0
        %2340 = vmatprep.subr.bf16.mxu0 0
        %2341 = vmatpush1.bf16.msra.mxu0 0
        %2342 = vmatprep.mubr.bf16.mxu0 0
        %2343 = vmatmul.mubr.bf16.gmra.mrb[0].mxu0 %v537
        %v2344 = vpop.f32.mrb[0].mxu0
        %v2345 = vadd.f32 0.0, %v2344
        %v2346 = vpop.f32.mrb[0].mxu0
        %v2347 = vadd.f32 0.0, %v2346
        %v2348 = vpop.f32.mrb[0].mxu0
        %v2349 = vpop.f32.mrb[0].mxu0
        %2350 = vdwg.mxu0
        %2351 = vmatprep.subr.bf16.mxu0 %v2226
        %2352 = vmatpush1.bf16.msra.mxu0 %v2225
        %2353 = vmatprep.subr.bf16.mxu0 %v2261
        %2354 = vmatpush1.bf16.msra.mxu0 %v2258
        %2355 = vmatprep.subr.bf16.mxu0 0
        %2356 = vmatpush1.bf16.msra.mxu0 0
        %2357 = vmatprep.subr.bf16.mxu0 0
        %2358 = vmatpush1.bf16.msra.mxu0 0
        %2359 = vmatprep.subr.bf16.mxu0 0
        %2360 = vmatpush1.bf16.msra.mxu0 0
        %2361 = vmatprep.subr.bf16.mxu0 0
        %2362 = vmatpush1.bf16.msra.mxu0 0
        %2363 = vmatprep.subr.bf16.mxu0 0
        %2364 = vmatpush1.bf16.msra.mxu0 0
        %2365 = vmatprep.subr.bf16.mxu0 0
        %2366 = vmatpush1.bf16.msra.mxu0 0
        %2367 = vmatprep.subr.bf16.mxu0 0
        %2368 = vmatpush1.bf16.msra.mxu0 0
        %2369 = vmatprep.subr.bf16.mxu0 0
        %2370 = vmatpush1.bf16.msra.mxu0 0
        %2371 = vmatprep.subr.bf16.mxu0 0
        %2372 = vmatpush1.bf16.msra.mxu0 0
        %2373 = vmatprep.subr.bf16.mxu0 0
        %2374 = vmatpush1.bf16.msra.mxu0 0
        %2375 = vmatprep.subr.bf16.mxu0 0
        %2376 = vmatpush1.bf16.msra.mxu0 0
        %2377 = vmatprep.subr.bf16.mxu0 0
        %2378 = vmatpush1.bf16.msra.mxu0 0
        %2379 = vmatprep.subr.bf16.mxu0 0
        %2380 = vmatpush1.bf16.msra.mxu0 0
        %2381 = vmatprep.subr.bf16.mxu0 0
        %2382 = vmatpush1.bf16.msra.mxu0 0
        %2383 = vmatprep.mubr.bf16.mxu0 0
        %2384 = vmatmul.mubr.bf16.gmra.mrb[0].mxu0 %v537
        %v2385 = vpop.f32.mrb[0].mxu0
        %v2386 = vadd.f32 0.0, %v2385
        %v2387 = vpop.f32.mrb[0].mxu0
        %v2388 = vadd.f32 0.0, %v2387
        %v2389 = vpop.f32.mrb[0].mxu0
        %v2390 = vpop.f32.mrb[0].mxu0
        %2391 = vdwg.mxu0
        %2392 = vmatprep.subr.bf16.mxu0 %v2228
        %2393 = vmatpush1.bf16.msra.mxu0 %v2227
        %2394 = vmatprep.subr.bf16.mxu0 %v2267
        %2395 = vmatpush1.bf16.msra.mxu0 %v2264
        %2396 = vmatprep.subr.bf16.mxu0 0
        %2397 = vmatpush1.bf16.msra.mxu0 0
        %2398 = vmatprep.subr.bf16.mxu0 0
        %2399 = vmatpush1.bf16.msra.mxu0 0
        %2400 = vmatprep.subr.bf16.mxu0 0
        %2401 = vmatpush1.bf16.msra.mxu0 0
        %2402 = vmatprep.subr.bf16.mxu0 0
        %2403 = vmatpush1.bf16.msra.mxu0 0
        %2404 = vmatprep.subr.bf16.mxu0 0
        %2405 = vmatpush1.bf16.msra.mxu0 0
        %2406 = vmatprep.subr.bf16.mxu0 0
        %2407 = vmatpush1.bf16.msra.mxu0 0
        %2408 = vmatprep.subr.bf16.mxu0 0
        %2409 = vmatpush1.bf16.msra.mxu0 0
        %2410 = vmatprep.subr.bf16.mxu0 0
        %2411 = vmatpush1.bf16.msra.mxu0 0
        %2412 = vmatprep.subr.bf16.mxu0 0
        %2413 = vmatpush1.bf16.msra.mxu0 0
        %2414 = vmatprep.subr.bf16.mxu0 0
        %2415 = vmatpush1.bf16.msra.mxu0 0
        %2416 = vmatprep.subr.bf16.mxu0 0
        %2417 = vmatpush1.bf16.msra.mxu0 0
        %2418 = vmatprep.subr.bf16.mxu0 0
        %2419 = vmatpush1.bf16.msra.mxu0 0
        %2420 = vmatprep.subr.bf16.mxu0 0
        %2421 = vmatpush1.bf16.msra.mxu0 0
        %2422 = vmatprep.subr.bf16.mxu0 0
        %2423 = vmatpush1.bf16.msra.mxu0 0
        %2424 = vmatprep.mubr.bf16.mxu0 0
        %2425 = vmatmul.mubr.bf16.gmra.mrb[0].mxu0 %v537
        %v2426 = vpop.f32.mrb[0].mxu0
        %v2427 = vadd.f32 0.0, %v2426
        %v2428 = vpop.f32.mrb[0].mxu0
        %v2429 = vadd.f32 0.0, %v2428
        %v2430 = vpop.f32.mrb[0].mxu0
        %v2431 = vpop.f32.mrb[0].mxu0
        %2432 = vdwg.mxu0
        %v2433 = vmax.f32 %v2148, %v2304
        %v2434 = vmax.f32 %v2149, %v2306
        %v2435 = vmax.f32 %v2150, %v2345
        %v2436 = vmax.f32 %v2151, %v2347
        %v2437 = vmax.f32 %v2152, %v2386
        %v2438 = vmax.f32 %v2153, %v2388
        %v2439 = vmax.f32 %v2154, %v2427
        %v2440 = vmax.f32 %v2155, %v2429
        %s2441 = scalar_lea.vmem %s422, 896 [#allocation2]
        %v2442 = vld [vmem:[%s2441] sm:$0xff]
        %v2443 = vld [vmem:[%s2441 + $0x8] sm:$0xff]
        %v2444 = vld [vmem:[%s2441 + $0x10] sm:$0xff]
        %v2445 = vld [vmem:[%s2441 + $0x18] sm:$0xff]
        %v2446 = vld [vmem:[%s2441 + $0x20] sm:$0xff]
        %v2447 = vld [vmem:[%s2441 + $0x28] sm:$0xff]
        %v2448 = vld [vmem:[%s2441 + $0x30] sm:$0xff]
        %v2449 = vld [vmem:[%s2441 + $0x38] sm:$0xff]
        %v2450 = vld [vmem:[%s2441 + $0x40] sm:$0xff]
        %v2451 = vld [vmem:[%s2441 + $0x48] sm:$0xff]
        %v2452 = vld [vmem:[%s2441 + $0x50] sm:$0xff]
        %v2453 = vld [vmem:[%s2441 + $0x58] sm:$0xff]
        %v2454 = vld [vmem:[%s2441 + $0x60] sm:$0x33]
        %v2455 = vld [vmem:[%s2441 + $0x68] sm:$0x33]
        %v2456 = vld [vmem:[%s2441 + $0x70] sm:$0x33]
        %v2457 = vld [vmem:[%s2441 + $0x78] sm:$0x33]
        %v2474 = vunpack.c.l.b16 %v2442
        %v2475 = vunpack.c.h.b16 %v2442
        %v2476 = vunpack.c.l.b16 %v2443
        %v2477 = vunpack.c.h.b16 %v2443
        %v2478 = vunpack.c.l.b16 %v2444
        %v2479 = vunpack.c.h.b16 %v2444
        %v2480 = vunpack.c.l.b16 %v2445
        %v2481 = vunpack.c.h.b16 %v2445
        %v2482 = vunpack.c.l.b16 %v2446
        %v2483 = vunpack.c.h.b16 %v2446
        %v2484 = vunpack.c.l.b16 %v2447
        %v2485 = vunpack.c.h.b16 %v2447
        %v2486 = vunpack.c.l.b16 %v2448
        %v2487 = vunpack.c.h.b16 %v2448
        %v2488 = vunpack.c.l.b16 %v2449
        %v2489 = vunpack.c.h.b16 %v2449
        %v2490 = vunpack.c.l.b16 %v2450
        %v2491 = vunpack.c.h.b16 %v2450
        %v2492 = vunpack.c.l.b16 %v2451
        %v2493 = vunpack.c.h.b16 %v2451
        %v2494 = vunpack.c.l.b16 %v2452
        %v2495 = vunpack.c.h.b16 %v2452
        %v2496 = vunpack.c.l.b16 %v2453
        %v2497 = vunpack.c.h.b16 %v2453
        %v2498 = vunpack.c.l.b16 %v2454
        %v2499 = vunpack.c.h.b16 %v2454
        %v2500 = vunpack.c.l.b16 %v2455
        %v2501 = vunpack.c.h.b16 %v2455
        %v2502 = vunpack.c.l.b16 %v2456
        %v2503 = vunpack.c.h.b16 %v2456
        %v2504 = vunpack.c.l.b16 %v2457
        %v2505 = vunpack.c.h.b16 %v2457
        %v2506 = vpack.c.b16 %v2482, %v2474
        %v2507 = vpack.c.b16 %v2483, %v2475
        %v2508 = vpack.c.b16 %v2484, %v2476
        %v2509 = vpack.c.b16 %v2485, %v2477
        %v2510 = vpack.c.b16 %v2486, %v2478
        %v2511 = vpack.c.b16 %v2487, %v2479
        %v2512 = vpack.c.b16 %v2488, %v2480
        %v2513 = vpack.c.b16 %v2489, %v2481
        %v2514 = vpack.c.b16 %v2498, %v2490
        %v2515 = vpack.c.b16 %v2499, %v2491
        %v2516 = vpack.c.b16 %v2500, %v2492
        %v2517 = vpack.c.b16 %v2501, %v2493
        %v2518 = vpack.c.b16 %v2502, %v2494
        %v2519 = vpack.c.b16 %v2503, %v2495
        %v2520 = vpack.c.b16 %v2504, %v2496
        %v2521 = vpack.c.b16 %v2505, %v2497
        %v2531 = vand.u32 %v2514, %v542
        %v2534 = vand.u32 %v2515, %v542
        %v2537 = vand.u32 %v2516, %v542
        %v2540 = vand.u32 %v2517, %v542
        %v2543 = vand.u32 %v2518, %v542
        %v2546 = vand.u32 %v2519, %v542
        %v2549 = vand.u32 %v2520, %v542
        %v2552 = vand.u32 %v2521, %v542
        %2554 = vmatprep.subr.bf16.mxu0 %v2507
        %2555 = vmatpush1.bf16.msra.mxu0 %v2506
        %2556 = vmatprep.subr.bf16.mxu0 %v2534
        %2557 = vmatpush1.bf16.msra.mxu0 %v2531
        %2558 = vmatprep.subr.bf16.mxu0 0
        %2559 = vmatpush1.bf16.msra.mxu0 0
        %2560 = vmatprep.subr.bf16.mxu0 0
        %2561 = vmatpush1.bf16.msra.mxu0 0
        %2562 = vmatprep.subr.bf16.mxu0 0
        %2563 = vmatpush1.bf16.msra.mxu0 0
        %2564 = vmatprep.subr.bf16.mxu0 0
        %2565 = vmatpush1.bf16.msra.mxu0 0
        %2566 = vmatprep.subr.bf16.mxu0 0
        %2567 = vmatpush1.bf16.msra.mxu0 0
        %2568 = vmatprep.subr.bf16.mxu0 0
        %2569 = vmatpush1.bf16.msra.mxu0 0
        %2570 = vmatprep.subr.bf16.mxu0 0
        %2571 = vmatpush1.bf16.msra.mxu0 0
        %2572 = vmatprep.subr.bf16.mxu0 0
        %2573 = vmatpush1.bf16.msra.mxu0 0
        %2574 = vmatprep.subr.bf16.mxu0 0
        %2575 = vmatpush1.bf16.msra.mxu0 0
        %2576 = vmatprep.subr.bf16.mxu0 0
        %2577 = vmatpush1.bf16.msra.mxu0 0
        %2578 = vmatprep.subr.bf16.mxu0 0
        %2579 = vmatpush1.bf16.msra.mxu0 0
        %2580 = vmatprep.subr.bf16.mxu0 0
        %2581 = vmatpush1.bf16.msra.mxu0 0
        %2582 = vmatprep.subr.bf16.mxu0 0
        %2583 = vmatpush1.bf16.msra.mxu0 0
        %2584 = vmatprep.subr.bf16.mxu0 0
        %2585 = vmatpush1.bf16.msra.mxu0 0
        %2586 = vmatprep.mubr.bf16.mxu0 0
        %2587 = vmatmul.mubr.bf16.gmra.mrb[0].mxu0 %v537
        %v2588 = vpop.f32.mrb[0].mxu0
        %v2589 = vadd.f32 0.0, %v2588
        %v2590 = vpop.f32.mrb[0].mxu0
        %v2591 = vadd.f32 0.0, %v2590
        %v2592 = vpop.f32.mrb[0].mxu0
        %v2593 = vpop.f32.mrb[0].mxu0
        %2594 = vdwg.mxu0
        %2595 = vmatprep.subr.bf16.mxu0 %v2509
        %2596 = vmatpush1.bf16.msra.mxu0 %v2508
        %2597 = vmatprep.subr.bf16.mxu0 %v2540
        %2598 = vmatpush1.bf16.msra.mxu0 %v2537
        %2599 = vmatprep.subr.bf16.mxu0 0
        %2600 = vmatpush1.bf16.msra.mxu0 0
        %2601 = vmatprep.subr.bf16.mxu0 0
        %2602 = vmatpush1.bf16.msra.mxu0 0
        %2603 = vmatprep.subr.bf16.mxu0 0
        %2604 = vmatpush1.bf16.msra.mxu0 0
        %2605 = vmatprep.subr.bf16.mxu0 0
        %2606 = vmatpush1.bf16.msra.mxu0 0
        %2607 = vmatprep.subr.bf16.mxu0 0
        %2608 = vmatpush1.bf16.msra.mxu0 0
        %2609 = vmatprep.subr.bf16.mxu0 0
        %2610 = vmatpush1.bf16.msra.mxu0 0
        %2611 = vmatprep.subr.bf16.mxu0 0
        %2612 = vmatpush1.bf16.msra.mxu0 0
        %2613 = vmatprep.subr.bf16.mxu0 0
        %2614 = vmatpush1.bf16.msra.mxu0 0
        %2615 = vmatprep.subr.bf16.mxu0 0
        %2616 = vmatpush1.bf16.msra.mxu0 0
        %2617 = vmatprep.subr.bf16.mxu0 0
        %2618 = vmatpush1.bf16.msra.mxu0 0
        %2619 = vmatprep.subr.bf16.mxu0 0
        %2620 = vmatpush1.bf16.msra.mxu0 0
        %2621 = vmatprep.subr.bf16.mxu0 0
        %2622 = vmatpush1.bf16.msra.mxu0 0
        %2623 = vmatprep.subr.bf16.mxu0 0
        %2624 = vmatpush1.bf16.msra.mxu0 0
        %2625 = vmatprep.subr.bf16.mxu0 0
        %2626 = vmatpush1.bf16.msra.mxu0 0
        %2627 = vmatprep.mubr.bf16.mxu0 0
        %2628 = vmatmul.mubr.bf16.gmra.mrb[0].mxu0 %v537
        %v2629 = vpop.f32.mrb[0].mxu0
        %v2630 = vadd.f32 0.0, %v2629
        %v2631 = vpop.f32.mrb[0].mxu0
        %v2632 = vadd.f32 0.0, %v2631
        %v2633 = vpop.f32.mrb[0].mxu0
        %v2634 = vpop.f32.mrb[0].mxu0
        %2635 = vdwg.mxu0
        %2636 = vmatprep.subr.bf16.mxu0 %v2511
        %2637 = vmatpush1.bf16.msra.mxu0 %v2510
        %2638 = vmatprep.subr.bf16.mxu0 %v2546
        %2639 = vmatpush1.bf16.msra.mxu0 %v2543
        %2640 = vmatprep.subr.bf16.mxu0 0
        %2641 = vmatpush1.bf16.msra.mxu0 0
        %2642 = vmatprep.subr.bf16.mxu0 0
        %2643 = vmatpush1.bf16.msra.mxu0 0
        %2644 = vmatprep.subr.bf16.mxu0 0
        %2645 = vmatpush1.bf16.msra.mxu0 0
        %2646 = vmatprep.subr.bf16.mxu0 0
        %2647 = vmatpush1.bf16.msra.mxu0 0
        %2648 = vmatprep.subr.bf16.mxu0 0
        %2649 = vmatpush1.bf16.msra.mxu0 0
        %2650 = vmatprep.subr.bf16.mxu0 0
        %2651 = vmatpush1.bf16.msra.mxu0 0
        %2652 = vmatprep.subr.bf16.mxu0 0
        %2653 = vmatpush1.bf16.msra.mxu0 0
        %2654 = vmatprep.subr.bf16.mxu0 0
        %2655 = vmatpush1.bf16.msra.mxu0 0
        %2656 = vmatprep.subr.bf16.mxu0 0
        %2657 = vmatpush1.bf16.msra.mxu0 0
        %2658 = vmatprep.subr.bf16.mxu0 0
        %2659 = vmatpush1.bf16.msra.mxu0 0
        %2660 = vmatprep.subr.bf16.mxu0 0
        %2661 = vmatpush1.bf16.msra.mxu0 0
        %2662 = vmatprep.subr.bf16.mxu0 0
        %2663 = vmatpush1.bf16.msra.mxu0 0
        %2664 = vmatprep.subr.bf16.mxu0 0
        %2665 = vmatpush1.bf16.msra.mxu0 0
        %2666 = vmatprep.subr.bf16.mxu0 0
        %2667 = vmatpush1.bf16.msra.mxu0 0
        %2668 = vmatprep.mubr.bf16.mxu0 0
        %2669 = vmatmul.mubr.bf16.gmra.mrb[0].mxu0 %v537
        %v2670 = vpop.f32.mrb[0].mxu0
        %v2671 = vadd.f32 0.0, %v2670
        %v2672 = vpop.f32.mrb[0].mxu0
        %v2673 = vadd.f32 0.0, %v2672
        %v2674 = vpop.f32.mrb[0].mxu0
        %v2675 = vpop.f32.mrb[0].mxu0
        %2676 = vdwg.mxu0
        %2677 = vmatprep.subr.bf16.mxu0 %v2513
        %2678 = vmatpush1.bf16.msra.mxu0 %v2512
        %2679 = vmatprep.subr.bf16.mxu0 %v2552
        %2680 = vmatpush1.bf16.msra.mxu0 %v2549
        %2681 = vmatprep.subr.bf16.mxu0 0
        %2682 = vmatpush1.bf16.msra.mxu0 0
        %2683 = vmatprep.subr.bf16.mxu0 0
        %2684 = vmatpush1.bf16.msra.mxu0 0
        %2685 = vmatprep.subr.bf16.mxu0 0
        %2686 = vmatpush1.bf16.msra.mxu0 0
        %2687 = vmatprep.subr.bf16.mxu0 0
        %2688 = vmatpush1.bf16.msra.mxu0 0
        %2689 = vmatprep.subr.bf16.mxu0 0
        %2690 = vmatpush1.bf16.msra.mxu0 0
        %2691 = vmatprep.subr.bf16.mxu0 0
        %2692 = vmatpush1.bf16.msra.mxu0 0
        %2693 = vmatprep.subr.bf16.mxu0 0
        %2694 = vmatpush1.bf16.msra.mxu0 0
        %2695 = vmatprep.subr.bf16.mxu0 0
        %2696 = vmatpush1.bf16.msra.mxu0 0
        %2697 = vmatprep.subr.bf16.mxu0 0
        %2698 = vmatpush1.bf16.msra.mxu0 0
        %2699 = vmatprep.subr.bf16.mxu0 0
        %2700 = vmatpush1.bf16.msra.mxu0 0
        %2701 = vmatprep.subr.bf16.mxu0 0
        %2702 = vmatpush1.bf16.msra.mxu0 0
        %2703 = vmatprep.subr.bf16.mxu0 0
        %2704 = vmatpush1.bf16.msra.mxu0 0
        %2705 = vmatprep.subr.bf16.mxu0 0
        %2706 = vmatpush1.bf16.msra.mxu0 0
        %2707 = vmatprep.subr.bf16.mxu0 0
        %2708 = vmatpush1.bf16.msra.mxu0 0
        %2709 = vmatprep.mubr.bf16.mxu0 0
        %2710 = vmatmul.mubr.bf16.gmra.mrb[0].mxu0 %v537
        %v2711 = vpop.f32.mrb[0].mxu0
        %v2712 = vadd.f32 0.0, %v2711
        %v2713 = vpop.f32.mrb[0].mxu0
        %v2714 = vadd.f32 0.0, %v2713
        %v2715 = vpop.f32.mrb[0].mxu0
        %v2716 = vpop.f32.mrb[0].mxu0
        %2717 = vdwg.mxu0
        %v2718 = vmax.f32 %v2433, %v2589
        %v2719 = vmax.f32 %v2434, %v2591
        %v2720 = vmax.f32 %v2435, %v2630
        %v2721 = vmax.f32 %v2436, %v2632
        %v2722 = vmax.f32 %v2437, %v2671
        %v2723 = vmax.f32 %v2438, %v2673
        %v2724 = vmax.f32 %v2439, %v2712
        %v2725 = vmax.f32 %v2440, %v2714
        %v2726 = vld [vmem:[%s1] sm:$0xf]
        %2728 = vset.pattern.permute.xlu0 0
        %2729 = vperm.xlu0 %2728, %v2726
        %v2730 = vpop.permute.xlu0 %2729
        %v2732 = vadd.f32 %v2718, %v2730
        %v2733 = vadd.f32 %v2719, %v2730
        %v2734 = vadd.f32 %v2720, %v2730
        %v2735 = vadd.f32 %v2721, %v2730
        %v2736 = vadd.f32 %v2722, %v2730
        %v2737 = vadd.f32 %v2723, %v2730
        %v2738 = vadd.f32 %v2724, %v2730
        %v2739 = vadd.f32 %v2725, %v2730
        %v2740 = vmax.f32 %v2732, 0.0
        %v2741 = vmax.f32 %v2733, 0.0
        %v2742 = vmax.f32 %v2734, 0.0
        %v2743 = vmax.f32 %v2735, 0.0
        %v2744 = vmax.f32 %v2736, 0.0
        %v2745 = vmax.f32 %v2737, 0.0
        %v2746 = vmax.f32 %v2738, 0.0
        %v2747 = vmax.f32 %v2739, 0.0
        %v2756 = vcombine.low %v2740, %v2741
        %v2757 = vcombine.low %v2742, %v2743
        %v2758 = vcombine.low %v2744, %v2745
        %v2759 = vcombine.low %v2746, %v2747
        %2764 = vst [vmem:[%s442] sm:$0xff] %v2756
        %2765 = vst [vmem:[%s442 + $0x8] sm:$0xff] %v2757
        %2766 = vst [vmem:[%s442 + $0x10] sm:$0xff] %v2758
        %2767 = vst [vmem:[%s442 + $0x18] sm:$0xff] %v2759
        %s2768 = sand.u32 %s93, 1
        %s2769 = scalar_lea.sflag [#allocation4], %s2768
        %s2770 = sand.u32 %s93, 1
        %s2771 = smul.addr %s2770, 32
        %s2772 = scalar_lea.vmem [#allocation3], %s2771
        // Predicated region
        $region56: #{tpu_custom_call.1} parent=50 // pred_check
          %p2773 = pneg %p103
        $region57: #{tpu_custom_call.1} parent=50 // pred_check_branch
          %2775 = sbr.rel (%p2773) target = $region59
        $region58: #{tpu_custom_call.1} parent=50 // pred_region
          %s2776 = smul.u32 8, %s17
          %s2778 = ssub.s32 512, 512
          %2779 = vsyncadd %s2769, %s2778
          %s2780 = smul.addr %s2776, 64
          %s2781 = scalar_lea.hbm %s3, %s2780
          %s2783 = sshll.u32 %s2772, 4
          %s2784 = int_to_ptr.vmem [resolvable:$true] %s2783
          %2786 = dma.vmem_to_hbm [thread:$0]  %s2784, 512, %s2781, %s2769
        $region59: #{tpu_custom_call.1} parent=50 // pred_fallthru
          _
      $region51: #{tpu_custom_call.1} parent=5 // pred_fallthru
        _
      %p2787 = scmp.le.s32.totalorder 2, %s12
      // Predicated region
      $region60: #{tpu_custom_call.1} parent=5 // pred_check
        %p2788 = pneg %p2787
      $region61: #{tpu_custom_call.1} parent=5 // pred_check_branch
        %2790 = sbr.rel (%p2788) target = $region63
      $region62: #{tpu_custom_call.1} parent=5 // pred_region
        %s2791 = ssub.s32 %s12, 2
        // Predicated region
        $region64: #{tpu_custom_call.1} parent=62 // pred_check
          %p2792 = pneg %p109
        $region65: #{tpu_custom_call.1} parent=62 // pred_check_branch
          %2794 = sbr.rel (%p2792) target = $region67
        $region66: #{tpu_custom_call.1} parent=62 // pred_region
          %s2795 = sand.u32 %s94, 1
          %s2796 = scalar_lea.sflag [#allocation4], %s2795
          %s2797 = sand.u32 %s94, 1
          %s2798 = smul.addr %s2797, 32
          %s2799 = scalar_lea.vmem [#allocation3], %s2798
          %2800 = dma.done %s2796, 512
        $region67: #{tpu_custom_call.1} parent=62 // pred_fallthru
          _
      $region63: #{tpu_custom_call.1} parent=5 // pred_fallthru
        _
    $region6: #{tpu_custom_call.1} parent=1 // loop_footer
      %s16 = sadd.s32 1, %s12
    $region7: #{tpu_custom_call.1} parent=1 // loop_footer_branch
      %11 = sbr.rel target = $region3
    $region8: #{tpu_custom_call.1} parent=1 // loop_exit
      _
    %2801 = vsyncpa [#allocation4], 1
    %s2802 = scalar_lea.sflag [#allocation4], 1
    %2803 = vsyncpa %s2802, 1

</llo_original>
